<compile_context>
chip_gen: v7x
topology: tpu7x:2x2x1
jax: 0.10.0
libtpu: 0.0.40
codegen_flags: <defaults>
</compile_context>

<pallas_src>
import functools

import jax
import jax.numpy as jnp
from jax.experimental import pallas as pl
from jax.experimental.pallas import tpu as pltpu


def _round_up(n, m):
    return ((n + m - 1) // m) * m


def _mgn_kernel(x_ref, w1_ref, b1_ref, w3_ref, b3_ref, eps_ref,
                z_ref, mu_ref, lv_ref, *,
                zp, fixed_std, scale_std, compute_dtype):
    """Fused: Linear -> ReLU -> merged (mu|logvar) Linear -> reparam sample."""
    x = x_ref[...].astype(compute_dtype)

    # First layer (weights are pre-cast / pre-padded in prepare_params).
    h = jnp.dot(x, w1_ref[...], preferred_element_type=jnp.float32) + b1_ref[...]
    h = jnp.maximum(h, 0.0)  # F.relu

    # Single merged head matmul: cols [0:zp) are mu, [zp:2*zp) are log_var.
    # zp is a multiple of 128, so both slices fall on vreg/lane-tile boundaries.
    mu_lv = jnp.dot(h.astype(compute_dtype), w3_ref[...],
                    preferred_element_type=jnp.float32) + b3_ref[...]
    mu = mu_lv[:, :zp]
    logvar = mu_lv[:, zp:]

    eps = eps_ref[...]
    if scale_std:
        z = eps * (fixed_std * jnp.exp(0.5 * logvar)) + mu
    else:
        # Fold the constant std: no jnp.full_like materialization.
        z = (eps + mu) if fixed_std == 1.0 else (eps * fixed_std + mu)

    # Three lane-dense (128-multiple wide) stores; no concatenation.
    z_ref[...] = z.astype(z_ref.dtype)
    mu_ref[...] = mu.astype(mu_ref.dtype)
    lv_ref[...] = logvar.astype(lv_ref.dtype)


def _vmem_capacity_bytes():
    try:
        return int(pltpu.get_tpu_info().vmem_capacity_bytes)
    except Exception:
        return 64 << 20  # conservative (v7x per-TC VMEM)


def _choose_block_b(B, requested, resident_bytes, per_row_io, per_row_tmp, budget):
    if requested is not None:
        assert B % requested == 0, "block_b must divide B"
        assert requested == B or requested % 8 == 0, "block_b must be a multiple of 8"
        return requested
    per_row = 2 * per_row_io + per_row_tmp  # double-buffered I/O tiles + intermediates
    avail = max(budget - resident_bytes, 8 * per_row)
    max_rows = max(avail // per_row, 8)
    cap = int(min(B, 2048, max_rows))
    # Guarantee grid >= 2 when B permits: pipelining + both v7x TensorCores.
    if B >= 16 and cap > B // 2:
        cap = B // 2
    for cand in range(cap, 0, -1):
        if B % cand == 0 and (cand % 8 == 0 or cand == B):
            return cand
    return B


def prepare_params(params, *, use_bf16=True, lane_multiple=128):
    """One-time weight prep: merge heads, zero-pad dims to 128, cast to bf16.

    params: dict with w1 (x_dim, h1), b1 (1, h1), w31/w32 (h1, z), b31/b32 (1, z)
            (weights stored pre-transposed: (in_dim, out_dim)).
    """
    w1 = jnp.asarray(params["w1"], jnp.float32)
    b1 = jnp.asarray(params["b1"], jnp.float32).reshape(1, -1)
    w31 = jnp.asarray(params["w31"], jnp.float32)
    w32 = jnp.asarray(params["w32"], jnp.float32)
    b31 = jnp.asarray(params["b31"], jnp.float32).reshape(1, -1)
    b32 = jnp.asarray(params["b32"], jnp.float32).reshape(1, -1)

    x_dim, h1 = w1.shape
    z_dim = w31.shape[1]
    xp = _round_up(x_dim, lane_multiple)
    h1p = _round_up(h1, lane_multiple)
    zp = _round_up(z_dim, lane_multiple)

    wdt = jnp.bfloat16 if use_bf16 else jnp.float32
    # TODO(synk): optional fp8 weight storage on v7x (bf16+fp8 MXU) behind an
    # accuracy flag; not portable to v5e/v6e so kept bf16/f32 here.

    w1p = jnp.zeros((xp, h1p), jnp.float32).at[:x_dim, :h1].set(w1).astype(wdt)
    b1p = jnp.zeros((1, h1p), jnp.float32).at[:, :h1].set(b1)
    w3p = (jnp.zeros((h1p, 2 * zp), jnp.float32)
           .at[:h1, :z_dim].set(w31)
           .at[:h1, zp:zp + z_dim].set(w32)
           .astype(wdt))
    b3p = (jnp.zeros((1, 2 * zp), jnp.float32)
           .at[:, :z_dim].set(b31)
           .at[:, zp:zp + z_dim].set(b32))

    return dict(w1=w1p, b1=b1p, w3=w3p, b3=b3p,
                x_dim=x_dim, h1=h1, z_dim=z_dim,
                xp=xp, h1p=h1p, zp=zp, compute_dtype=wdt)


def mgn_forward(x, prep, eps, *, fixed_std=1.0, scale_std=True,
                block_b=None, vmem_limit_bytes=None, single_buffer_weights=True):
    """MGN 'mlp' forward: x (B, x_dim) f32, eps (B, z_dim) f32 -> (z, mu, log_var)."""
    B, x_dim = x.shape
    assert x_dim == prep["x_dim"], "x feature dim mismatch with prepared params"
    z_dim = prep["z_dim"]
    xp, h1p, zp = prep["xp"], prep["h1p"], prep["zp"]
    compute_dtype = prep["compute_dtype"]
    w1, b1, w3, b3 = prep["w1"], prep["b1"], prep["w3"], prep["b3"]

    # Pad activation / noise lanes to 128 multiples (no-op when already aligned).
    if xp != x_dim:
        x = jnp.pad(x, ((0, 0), (0, xp - x_dim)))
    if zp != eps.shape[1]:
        eps = jnp.pad(eps, ((0, 0), (0, zp - eps.shape[1])))

    resident_bytes = w1.nbytes + b1.nbytes + w3.nbytes + b3.nbytes
    per_row_io = (xp + zp + 3 * zp) * 4           # x + eps + 3 outputs (f32)
    per_row_tmp = (h1p + 2 * zp) * 4              # h + mu_lv intermediates (f32)

    vmem_cap = _vmem_capacity_bytes()
    budget = int(vmem_cap * 0.7)
    block_b = _choose_block_b(B, block_b, resident_bytes, per_row_io, per_row_tmp,
                              budget)
    grid = (B // block_b,)

    if vmem_limit_bytes is None:
        need = (resident_bytes * (1 if single_buffer_weights else 2)
                + 2 * block_b * per_row_io + block_b * per_row_tmp + (4 << 20))
        vmem_limit_bytes = int(min(max(need, 4 << 20), budget))

    kernel = functools.partial(
        _mgn_kernel, zp=zp, fixed_std=float(fixed_std),
        scale_std=bool(scale_std), compute_dtype=compute_dtype)

    cost = pl.CostEstimate(
        flops=int(2 * B * (xp * h1p + h1p * 2 * zp) + 6 * B * zp),
        transcendentals=int(B * zp) if scale_std else 0,
        bytes_accessed=int((B * xp + B * zp + 3 * B * zp) * 4
                           + resident_bytes),
    )

    out_shapes = (jax.ShapeDtypeStruct((B, zp), jnp.float32),   # z
                  jax.ShapeDtypeStruct((B, zp), jnp.float32),   # mu
                  jax.ShapeDtypeStruct((B, zp), jnp.float32))   # log_var

    def _run(weight_pipeline_mode):
        def const_spec(shape):
            idx = lambda i: tuple(0 for _ in shape)
            if weight_pipeline_mode is None:
                return pl.BlockSpec(shape, idx)
            return pl.BlockSpec(shape, idx, pipeline_mode=weight_pipeline_mode)

        grid_spec = pltpu.PrefetchScalarGridSpec(
            num_scalar_prefetch=0,
            grid=grid,
            in_specs=[
                pl.BlockSpec((block_b, xp), lambda i: (i, 0)),    # x (tiled)
                const_spec((xp, h1p)),                            # w1 (resident)
                const_spec((1, h1p)),                             # b1
                const_spec((h1p, 2 * zp)),                        # w3 = [w31|w32]
                const_spec((1, 2 * zp)),                          # b3 = [b31|b32]
                pl.BlockSpec((block_b, zp), lambda i: (i, 0)),    # eps (tiled)
            ],
            out_specs=[
                pl.BlockSpec((block_b, zp), lambda i: (i, 0)),    # z
                pl.BlockSpec((block_b, zp), lambda i: (i, 0)),    # mu
                pl.BlockSpec((block_b, zp), lambda i: (i, 0)),    # log_var
            ],
        )
        return pl.pallas_call(
            kernel,
            out_shape=out_shapes,
            grid_spec=grid_spec,
            compiler_params=pltpu.CompilerParams(
                dimension_semantics=("parallel",),
                vmem_limit_bytes=int(vmem_limit_bytes)),
            cost_estimate=cost,
        )(x, w1, b1, w3, b3, eps)

    if single_buffer_weights and hasattr(pl, "Buffered"):
        try:
            z_p, mu_p, lv_p = _run(pl.Buffered(1))
        except Exception:
            # Fallback: default double-buffered constant specs.
            z_p, mu_p, lv_p = _run(None)
    else:
        z_p, mu_p, lv_p = _run(None)

    return z_p[:, :z_dim], mu_p[:, :z_dim], lv_p[:, :z_dim]


def init_params(key, x_dim, h_dim1, z_dim):
    """Deterministic init matching nn.Linear shapes (stored transposed)."""
    ks = jax.random.split(key, 6)

    def lin(kw, kb, fan_in, fan_out):
        bound = 1.0 / jnp.sqrt(fan_in)
        w = jax.random.uniform(kw, (fan_in, fan_out), jnp.float32, -bound, bound)
        b = jax.random.uniform(kb, (1, fan_out), jnp.float32, -bound, bound)
        return w, b

    w1, b1 = lin(ks[0], ks[1], x_dim, h_dim1)
    w31, b31 = lin(ks[2], ks[3], h_dim1, z_dim)
    w32, b32 = lin(ks[4], ks[5], h_dim1, z_dim)
    return {"w1": w1, "b1": b1, "w31": w31, "b31": b31, "w32": w32, "b32": b32}


def _reference_forward(x, params, eps, fixed_std, scale_std):
    hp = jax.lax.Precision.HIGHEST
    h = jnp.maximum(jnp.dot(x, params["w1"], precision=hp) + params["b1"], 0.0)
    mu = jnp.dot(h, params["w31"], precision=hp) + params["b31"]
    lv = jnp.dot(h, params["w32"], precision=hp) + params["b32"]
    std = fixed_std * jnp.exp(0.5 * lv) if scale_std else fixed_std * jnp.ones_like(lv)
    return eps * std + mu, mu, lv


if __name__ == "__main__":
    B, x_dim, h_dim1, z_dim = 64, 32, 32, 16
    fixed_std, scale_std = 1.0, True

    key = jax.random.PRNGKey(0)
    k_x, k_p, k_eps = jax.random.split(key, 3)

    x = jax.random.normal(k_x, (B, x_dim), dtype=jnp.float32)
    params = init_params(k_p, x_dim, h_dim1, z_dim)
    eps = jax.random.normal(k_eps, (B, z_dim), dtype=jnp.float32)

    z_ref, mu_ref, lv_ref = _reference_forward(x, params, eps, fixed_std, scale_std)

    # Validation path: f32 weights, tight tolerance vs. f32 reference.
    prep32 = prepare_params(params, use_bf16=False)
    z32, mu32, lv32 = mgn_forward(x, prep32, eps, fixed_std=fixed_std,
                                  scale_std=scale_std)
    jax.block_until_ready((z32, mu32, lv32))
    assert z32.shape == (B, z_dim) and mu32.shape == (B, z_dim) and lv32.shape == (B, z_dim)
    assert jnp.allclose(mu32, mu_ref, atol=5e-3), "f32 mu mismatch"
    assert jnp.allclose(lv32, lv_ref, atol=5e-3), "f32 log_var mismatch"
    assert jnp.allclose(z32, z_ref, atol=5e-3), "f32 z mismatch"

    # Fast path: bf16 weights / f32 accumulation, loose tolerance vs. f32 reference.
    prep16 = prepare_params(params, use_bf16=True)
    z16, mu16, lv16 = mgn_forward(x, prep16, eps, fixed_std=fixed_std,
                                  scale_std=scale_std)
    jax.block_until_ready((z16, mu16, lv16))
    assert jnp.allclose(mu16, mu_ref, atol=1e-1), "bf16 mu mismatch"
    assert jnp.allclose(lv16, lv_ref, atol=1e-1), "bf16 log_var mismatch"
    assert jnp.allclose(z16, z_ref, atol=1.5e-1), "bf16 z mismatch"

    print("KERNEL_OK")
</pallas_src>

<mosaic_0001>
module attributes {stable_mosaic.version = 11 : i64} {
  func.func @_mgn_kernel(%arg0: i32, %arg1: memref<32x128xf32, #tpu.memory_space<vmem>>, %arg2: memref<128x128xf32, #tpu.memory_space<vmem>>, %arg3: memref<1x128xf32, #tpu.memory_space<vmem>>, %arg4: memref<128x256xf32, #tpu.memory_space<vmem>>, %arg5: memref<1x256xf32, #tpu.memory_space<vmem>>, %arg6: memref<32x128xf32, #tpu.memory_space<vmem>>, %arg7: memref<32x128xf32, #tpu.memory_space<vmem>>, %arg8: memref<32x128xf32, #tpu.memory_space<vmem>>, %arg9: memref<32x128xf32, #tpu.memory_space<vmem>>) attributes {dimension_semantics = [#tpu.dimension_semantics<parallel>], iteration_bounds = array<i64: 2>, scalar_prefetch = 0 : i64, scratch_operands = 0 : i64, tpu.core_type = #tpu.core_type<tc>, window_params = [{transform_indices = @transform_0, window_bounds = array<i64: 32, 128>}, {pipeline_mode = #tpu.pipeline_mode<synchronous>, transform_indices = @transform_1, window_bounds = array<i64: 128, 128>}, {pipeline_mode = #tpu.pipeline_mode<synchronous>, transform_indices = @transform_2, window_bounds = array<i64: 1, 128>}, {pipeline_mode = #tpu.pipeline_mode<synchronous>, transform_indices = @transform_3, window_bounds = array<i64: 128, 256>}, {pipeline_mode = #tpu.pipeline_mode<synchronous>, transform_indices = @transform_4, window_bounds = array<i64: 1, 256>}, {transform_indices = @transform_5, window_bounds = array<i64: 32, 128>}, {transform_indices = @transform_6, window_bounds = array<i64: 32, 128>}, {transform_indices = @transform_7, window_bounds = array<i64: 32, 128>}, {transform_indices = @transform_8, window_bounds = array<i64: 32, 128>}]} {
    %c0 = arith.constant 0 : index
    %c0_0 = arith.constant 0 : index
    %0 = vector.load %arg1[%c0, %c0_0] : memref<32x128xf32, #tpu.memory_space<vmem>>, vector<32x128xf32>
    %c0_1 = arith.constant 0 : index
    %c0_2 = arith.constant 0 : index
    %1 = vector.load %arg2[%c0_1, %c0_2] : memref<128x128xf32, #tpu.memory_space<vmem>>, vector<128x128xf32>
    %cst = arith.constant dense<0.000000e+00> : vector<32x128xf32>
    %2 = tpu.matmul %0, %1, %cst {dimension_numbers = #tpu.dot_dimension_numbers<[1], [0], [0], [1], [0, 0, 1, 1], [], []>} : vector<32x128xf32>, vector<128x128xf32>, vector<32x128xf32> -> vector<32x128xf32>
    %c0_3 = arith.constant 0 : index
    %c0_4 = arith.constant 0 : index
    %3 = vector.load %arg3[%c0_3, %c0_4] : memref<1x128xf32, #tpu.memory_space<vmem>>, vector<1x128xf32>
    %4 = vector.broadcast %3 : vector<1x128xf32> to vector<32x128xf32>
    %5 = arith.addf %2, %4 : vector<32x128xf32>
    %cst_5 = arith.constant 0.000000e+00 : f32
    %6 = vector.broadcast %cst_5 : f32 to vector<32x128xf32>
    %7 = arith.maximumf %5, %6 : vector<32x128xf32>
    %c0_6 = arith.constant 0 : index
    %c0_7 = arith.constant 0 : index
    %8 = vector.load %arg4[%c0_6, %c0_7] : memref<128x256xf32, #tpu.memory_space<vmem>>, vector<128x256xf32>
    %cst_8 = arith.constant dense<0.000000e+00> : vector<32x256xf32>
    %9 = tpu.matmul %7, %8, %cst_8 {dimension_numbers = #tpu.dot_dimension_numbers<[1], [0], [0], [1], [0, 0, 1, 1], [], []>} : vector<32x128xf32>, vector<128x256xf32>, vector<32x256xf32> -> vector<32x256xf32>
    %c0_9 = arith.constant 0 : index
    %c0_10 = arith.constant 0 : index
    %10 = vector.load %arg5[%c0_9, %c0_10] : memref<1x256xf32, #tpu.memory_space<vmem>>, vector<1x256xf32>
    %11 = vector.broadcast %10 : vector<1x256xf32> to vector<32x256xf32>
    %12 = arith.addf %9, %11 : vector<32x256xf32>
    %13 = vector.extract_strided_slice %12 {offsets = [0, 0], sizes = [32, 128], strides = [1, 1]} : vector<32x256xf32> to vector<32x128xf32>
    %14 = vector.extract_strided_slice %12 {offsets = [0, 128], sizes = [32, 128], strides = [1, 1]} : vector<32x256xf32> to vector<32x128xf32>
    %c0_11 = arith.constant 0 : index
    %c0_12 = arith.constant 0 : index
    %15 = vector.load %arg6[%c0_11, %c0_12] : memref<32x128xf32, #tpu.memory_space<vmem>>, vector<32x128xf32>
    %cst_13 = arith.constant 5.000000e-01 : f32
    %16 = vector.broadcast %cst_13 : f32 to vector<32x128xf32>
    %17 = arith.mulf %16, %14 : vector<32x128xf32>
    %18 = math.exp %17 : vector<32x128xf32>
    %cst_14 = arith.constant 1.000000e+00 : f32
    %19 = vector.broadcast %cst_14 : f32 to vector<32x128xf32>
    %20 = arith.mulf %19, %18 : vector<32x128xf32>
    %21 = arith.mulf %15, %20 : vector<32x128xf32>
    %22 = arith.addf %21, %13 : vector<32x128xf32>
    %c0_15 = arith.constant 0 : index
    %c0_16 = arith.constant 0 : index
    %23 = vector.load %arg7[%c0_15, %c0_16] : memref<32x128xf32, #tpu.memory_space<vmem>>, vector<32x128xf32>
    tpu.vector_store %arg7[%c0_15, %c0_16], %22 {strides = array<i32>} : memref<32x128xf32, #tpu.memory_space<vmem>>, vector<32x128xf32>,
    %c0_17 = arith.constant 0 : index
    %c0_18 = arith.constant 0 : index
    %24 = vector.load %arg8[%c0_17, %c0_18] : memref<32x128xf32, #tpu.memory_space<vmem>>, vector<32x128xf32>
    tpu.vector_store %arg8[%c0_17, %c0_18], %13 {strides = array<i32>} : memref<32x128xf32, #tpu.memory_space<vmem>>, vector<32x128xf32>,
    %c0_19 = arith.constant 0 : index
    %c0_20 = arith.constant 0 : index
    %25 = vector.load %arg9[%c0_19, %c0_20] : memref<32x128xf32, #tpu.memory_space<vmem>>, vector<32x128xf32>
    tpu.vector_store %arg9[%c0_19, %c0_20], %14 {strides = array<i32>} : memref<32x128xf32, #tpu.memory_space<vmem>>, vector<32x128xf32>,
    return
  }
  func.func @transform_0(%arg0: i32) -> (i32, i32) {
    %c0_i32 = arith.constant 0 : i32
    %c0_i32_0 = arith.constant 0 : i32
    return %arg0, %c0_i32 : i32, i32
  }
  func.func @transform_1(%arg0: i32) -> (i32, i32) {
    %c0_i32 = arith.constant 0 : i32
    %c0_i32_0 = arith.constant 0 : i32
    %c0_i32_1 = arith.constant 0 : i32
    return %c0_i32, %c0_i32_0 : i32, i32
  }
  func.func @transform_2(%arg0: i32) -> (i32, i32) {
    %c0_i32 = arith.constant 0 : i32
    %c0_i32_0 = arith.constant 0 : i32
    %c0_i32_1 = arith.constant 0 : i32
    return %c0_i32, %c0_i32_0 : i32, i32
  }
  func.func @transform_3(%arg0: i32) -> (i32, i32) {
    %c0_i32 = arith.constant 0 : i32
    %c0_i32_0 = arith.constant 0 : i32
    %c0_i32_1 = arith.constant 0 : i32
    return %c0_i32, %c0_i32_0 : i32, i32
  }
  func.func @transform_4(%arg0: i32) -> (i32, i32) {
    %c0_i32 = arith.constant 0 : i32
    %c0_i32_0 = arith.constant 0 : i32
    %c0_i32_1 = arith.constant 0 : i32
    return %c0_i32, %c0_i32_0 : i32, i32
  }
  func.func @transform_5(%arg0: i32) -> (i32, i32) {
    %c0_i32 = arith.constant 0 : i32
    %c0_i32_0 = arith.constant 0 : i32
    return %arg0, %c0_i32 : i32, i32
  }
  func.func @transform_6(%arg0: i32) -> (i32, i32) {
    %c0_i32 = arith.constant 0 : i32
    %c0_i32_0 = arith.constant 0 : i32
    return %arg0, %c0_i32 : i32, i32
  }
  func.func @transform_7(%arg0: i32) -> (i32, i32) {
    %c0_i32 = arith.constant 0 : i32
    %c0_i32_0 = arith.constant 0 : i32
    return %arg0, %c0_i32 : i32, i32
  }
  func.func @transform_8(%arg0: i32) -> (i32, i32) {
    %c0_i32 = arith.constant 0 : i32
    %c0_i32_0 = arith.constant 0 : i32
    return %arg0, %c0_i32 : i32, i32
  }
}

module attributes {stable_mosaic.version = 11 : i64} {
  func.func @_mgn_kernel(%arg0: i32, %arg1: memref<32x128xf32, #tpu.memory_space<vmem>>, %arg2: memref<128x128xf32, #tpu.memory_space<vmem>>, %arg3: memref<1x128xf32, #tpu.memory_space<vmem>>, %arg4: memref<128x256xf32, #tpu.memory_space<vmem>>, %arg5: memref<1x256xf32, #tpu.memory_space<vmem>>, %arg6: memref<32x128xf32, #tpu.memory_space<vmem>>, %arg7: memref<32x128xf32, #tpu.memory_space<vmem>>, %arg8: memref<32x128xf32, #tpu.memory_space<vmem>>, %arg9: memref<32x128xf32, #tpu.memory_space<vmem>>) attributes {dimension_semantics = [#tpu.dimension_semantics<parallel>], iteration_bounds = array<i64: 2>, scalar_prefetch = 0 : i64, scratch_operands = 0 : i64, tpu.core_type = #tpu.core_type<tc>, window_params = [{transform_indices = @transform_0, window_bounds = array<i64: 32, 128>}, {pipeline_mode = #tpu.pipeline_mode<synchronous>, transform_indices = @transform_1, window_bounds = array<i64: 128, 128>}, {pipeline_mode = #tpu.pipeline_mode<synchronous>, transform_indices = @transform_2, window_bounds = array<i64: 1, 128>}, {pipeline_mode = #tpu.pipeline_mode<synchronous>, transform_indices = @transform_3, window_bounds = array<i64: 128, 256>}, {pipeline_mode = #tpu.pipeline_mode<synchronous>, transform_indices = @transform_4, window_bounds = array<i64: 1, 256>}, {transform_indices = @transform_5, window_bounds = array<i64: 32, 128>}, {transform_indices = @transform_6, window_bounds = array<i64: 32, 128>}, {transform_indices = @transform_7, window_bounds = array<i64: 32, 128>}, {transform_indices = @transform_8, window_bounds = array<i64: 32, 128>}]} {
    %c0 = arith.constant 0 : index
    %c0_0 = arith.constant 0 : index
    %0 = vector.load %arg1[%c0, %c0_0] : memref<32x128xf32, #tpu.memory_space<vmem>>, vector<32x128xf32>
    %c0_1 = arith.constant 0 : index
    %c0_2 = arith.constant 0 : index
    %1 = vector.load %arg2[%c0_1, %c0_2] : memref<128x128xf32, #tpu.memory_space<vmem>>, vector<128x128xf32>
    %cst = arith.constant dense<0.000000e+00> : vector<32x128xf32>
    %2 = tpu.matmul %0, %1, %cst {dimension_numbers = #tpu.dot_dimension_numbers<[1], [0], [0], [1], [0, 0, 1, 1], [], []>} : vector<32x128xf32>, vector<128x128xf32>, vector<32x128xf32> -> vector<32x128xf32>
    %c0_3 = arith.constant 0 : index
    %c0_4 = arith.constant 0 : index
    %3 = vector.load %arg3[%c0_3, %c0_4] : memref<1x128xf32, #tpu.memory_space<vmem>>, vector<1x128xf32>
    %4 = vector.broadcast %3 : vector<1x128xf32> to vector<32x128xf32>
    %5 = arith.addf %2, %4 : vector<32x128xf32>
    %cst_5 = arith.constant 0.000000e+00 : f32
    %6 = vector.broadcast %cst_5 : f32 to vector<32x128xf32>
    %7 = arith.maximumf %5, %6 : vector<32x128xf32>
    %c0_6 = arith.constant 0 : index
    %c0_7 = arith.constant 0 : index
    %8 = vector.load %arg4[%c0_6, %c0_7] : memref<128x256xf32, #tpu.memory_space<vmem>>, vector<128x256xf32>
    %cst_8 = arith.constant dense<0.000000e+00> : vector<32x256xf32>
    %9 = tpu.matmul %7, %8, %cst_8 {dimension_numbers = #tpu.dot_dimension_numbers<[1], [0], [0], [1], [0, 0, 1, 1], [], []>} : vector<32x128xf32>, vector<128x256xf32>, vector<32x256xf32> -> vector<32x256xf32>
    %c0_9 = arith.constant 0 : index
    %c0_10 = arith.constant 0 : index
    %10 = vector.load %arg5[%c0_9, %c0_10] : memref<1x256xf32, #tpu.memory_space<vmem>>, vector<1x256xf32>
    %11 = vector.broadcast %10 : vector<1x256xf32> to vector<32x256xf32>
    %12 = arith.addf %9, %11 : vector<32x256xf32>
    %13 = vector.extract_strided_slice %12 {offsets = [0, 0], sizes = [32, 128], strides = [1, 1]} : vector<32x256xf32> to vector<32x128xf32>
    %14 = vector.extract_strided_slice %12 {offsets = [0, 128], sizes = [32, 128], strides = [1, 1]} : vector<32x256xf32> to vector<32x128xf32>
    %c0_11 = arith.constant 0 : index
    %c0_12 = arith.constant 0 : index
    %15 = vector.load %arg6[%c0_11, %c0_12] : memref<32x128xf32, #tpu.memory_space<vmem>>, vector<32x128xf32>
    %cst_13 = arith.constant 5.000000e-01 : f32
    %16 = vector.broadcast %cst_13 : f32 to vector<32x128xf32>
    %17 = arith.mulf %16, %14 : vector<32x128xf32>
    %18 = math.exp %17 : vector<32x128xf32>
    %cst_14 = arith.constant 1.000000e+00 : f32
    %19 = vector.broadcast %cst_14 : f32 to vector<32x128xf32>
    %20 = arith.mulf %19, %18 : vector<32x128xf32>
    %21 = arith.mulf %15, %20 : vector<32x128xf32>
    %22 = arith.addf %21, %13 : vector<32x128xf32>
    %c0_15 = arith.constant 0 : index
    %c0_16 = arith.constant 0 : index
    %23 = vector.load %arg7[%c0_15, %c0_16] : memref<32x128xf32, #tpu.memory_space<vmem>>, vector<32x128xf32>
    tpu.vector_store %arg7[%c0_15, %c0_16], %22 {strides = array<i32>} : memref<32x128xf32, #tpu.memory_space<vmem>>, vector<32x128xf32>,
    %c0_17 = arith.constant 0 : index
    %c0_18 = arith.constant 0 : index
    %24 = vector.load %arg8[%c0_17, %c0_18] : memref<32x128xf32, #tpu.memory_space<vmem>>, vector<32x128xf32>
    tpu.vector_store %arg8[%c0_17, %c0_18], %13 {strides = array<i32>} : memref<32x128xf32, #tpu.memory_space<vmem>>, vector<32x128xf32>,
    %c0_19 = arith.constant 0 : index
    %c0_20 = arith.constant 0 : index
    %25 = vector.load %arg9[%c0_19, %c0_20] : memref<32x128xf32, #tpu.memory_space<vmem>>, vector<32x128xf32>
    tpu.vector_store %arg9[%c0_19, %c0_20], %14 {strides = array<i32>} : memref<32x128xf32, #tpu.memory_space<vmem>>, vector<32x128xf32>,
    return
  }
  func.func @transform_0(%arg0: i32) -> (i32, i32) {
    %c0_i32 = arith.constant 0 : i32
    %c0_i32_0 = arith.constant 0 : i32
    return %arg0, %c0_i32 : i32, i32
  }
  func.func @transform_1(%arg0: i32) -> (i32, i32) {
    %c0_i32 = arith.constant 0 : i32
    %c0_i32_0 = arith.constant 0 : i32
    %c0_i32_1 = arith.constant 0 : i32
    return %c0_i32, %c0_i32_0 : i32, i32
  }
  func.func @transform_2(%arg0: i32) -> (i32, i32) {
    %c0_i32 = arith.constant 0 : i32
    %c0_i32_0 = arith.constant 0 : i32
    %c0_i32_1 = arith.constant 0 : i32
    return %c0_i32, %c0_i32_0 : i32, i32
  }
  func.func @transform_3(%arg0: i32) -> (i32, i32) {
    %c0_i32 = arith.constant 0 : i32
    %c0_i32_0 = arith.constant 0 : i32
    %c0_i32_1 = arith.constant 0 : i32
    return %c0_i32, %c0_i32_0 : i32, i32
  }
  func.func @transform_4(%arg0: i32) -> (i32, i32) {
    %c0_i32 = arith.constant 0 : i32
    %c0_i32_0 = arith.constant 0 : i32
    %c0_i32_1 = arith.constant 0 : i32
    return %c0_i32, %c0_i32_0 : i32, i32
  }
  func.func @transform_5(%arg0: i32) -> (i32, i32) {
    %c0_i32 = arith.constant 0 : i32
    %c0_i32_0 = arith.constant 0 : i32
    return %arg0, %c0_i32 : i32, i32
  }
  func.func @transform_6(%arg0: i32) -> (i32, i32) {
    %c0_i32 = arith.constant 0 : i32
    %c0_i32_0 = arith.constant 0 : i32
    return %arg0, %c0_i32 : i32, i32
  }
  func.func @transform_7(%arg0: i32) -> (i32, i32) {
    %c0_i32 = arith.constant 0 : i32
    %c0_i32_0 = arith.constant 0 : i32
    return %arg0, %c0_i32 : i32, i32
  }
  func.func @transform_8(%arg0: i32) -> (i32, i32) {
    %c0_i32 = arith.constant 0 : i32
    %c0_i32_0 = arith.constant 0 : i32
    return %arg0, %c0_i32 : i32, i32
  }
}

</mosaic_0001>

<llo_original>
// kernel: tpu_custom_call.1
$region0: #{tpu_custom_call.1}
  #allocation0 [shape = 'u32[]', space=smem, size = 0x4, offset = 0x4, fixed_abs, tag = 'smem constant byte address 0x4 - core index']
  #allocation1 [shape = 'u32[144,128]{1,0:T(1,128)}', space=vmem, size = 0x12000, scoped, tag = 'internal scratch']
  %s0 = inlined_call_operand.hbm [shape: f32[64,128], index: 0, kind: input, shape index: {}]
  %s1 = inlined_call_operand.hbm [shape: f32[128,128], index: 1, kind: input, shape index: {}]
  %s2 = inlined_call_operand.vmem [shape: f32[1,128], index: 2, kind: input, shape index: {}]
  %s3 = inlined_call_operand.hbm [shape: f32[128,256], index: 3, kind: input, shape index: {}]
  %s4 = inlined_call_operand.vmem [shape: f32[1,256], index: 4, kind: input, shape index: {}]
  %s5 = inlined_call_operand.hbm [shape: f32[64,128], index: 5, kind: input, shape index: {}]
  %s6 = inlined_call_operand.hbm [shape: f32[64,128], index: 6, kind: output, shape index: {0}]
  %s7 = inlined_call_operand.hbm [shape: f32[64,128], index: 7, kind: output, shape index: {1}]
  %s8 = inlined_call_operand.hbm [shape: f32[64,128], index: 8, kind: output, shape index: {2}]
  %9 = xla_tuple %s6, %s7, %s8
  %s10 = sld [smem:[#allocation0]]
  $region89: #{tpu_custom_call.1} parent=0
    _
  %s12 = ssub.s32 1, %s10
  %s13 = scalar_select 0, %s12, %s10
  $region1: #{tpu_custom_call.1} parent=0
    #allocation2 [shape = 'u8[32768]{0}', space=vmem, size = 0x8000, scoped, tag = 'input window, operand 0']
    #allocation3 [shape = 's32[2]{0}', space=sflag, size = 0x8, scoped, tag = 'scoped memory for tpu_custom_call.1']
    #allocation4 [shape = 's32[2]{0}', space=sflag, size = 0x8, scoped, tag = 'scoped memory for tpu_custom_call.1']
    #allocation5 [shape = 'u8[65536]{0}', space=vmem, size = 0x10000, scoped, tag = 'input window, operand 1, single buffered']
    #allocation6 [shape = 's32[1]{0}', space=sflag, size = 0x4, scoped, tag = 'scoped memory for tpu_custom_call.1']
    #allocation7 [shape = 'u8[131072]{0}', space=vmem, size = 0x20000, scoped, tag = 'input window, operand 3, single buffered']
    #allocation8 [shape = 'u8[32768]{0}', space=vmem, size = 0x8000, scoped, tag = 'input window, operand 5']
    #allocation9 [shape = 's32[2]{0}', space=sflag, size = 0x8, scoped, tag = 'scoped memory for tpu_custom_call.1']
    #allocation10 [shape = 'u8[32768]{0}', space=vmem, size = 0x8000, scoped, tag = 'output window, operand 0']
    #allocation11 [shape = 'u8[32768]{0}', space=vmem, size = 0x8000, scoped, tag = 'output window, operand 1']
    #allocation12 [shape = 's32[2]{0}', space=sflag, size = 0x8, scoped, tag = 'scoped memory for tpu_custom_call.1']
    #allocation13 [shape = 'u8[32768]{0}', space=vmem, size = 0x8000, scoped, tag = 'output window, operand 2']
    %14 = vsyncpa [#allocation3], 0
    %s15 = scalar_lea.sflag [#allocation3], 1
    %16 = vsyncpa %s15, 0
    %17 = vsyncpa [#allocation6], 0
    %18 = vsyncpa [#allocation9], 0
    %s19 = scalar_lea.sflag [#allocation9], 1
    %20 = vsyncpa %s19, 0
    %21 = vsyncpa [#allocation4], 0
    %s22 = scalar_lea.sflag [#allocation4], 1
    %23 = vsyncpa %s22, 0
    %24 = vsyncpa [#allocation12], 0
    %s25 = scalar_lea.sflag [#allocation12], 1
    %26 = vsyncpa %s25, 0
    loop: start=0, step=1, limit=4
    $region2: #{tpu_custom_call.1} parent=1 // loop_pre_header
      _
    $region3: #{tpu_custom_call.1} parent=1 // loop_header
      %s28 = sphi 0, %s32
      %p29 = scmp.ge.s32.totalorder %s28, 4
      %s38 = sphi 0, %s40
      %s41 = sphi 0, %s38
      %s42 = sphi 0, %s41
      %s58 = sphi 0, %s42
      %s62 = sphi 0, %s62
      %s64 = sphi 0, %s62
      %s65 = sphi 0, %s64
      %s79 = sphi 0, %s65
      %s83 = sphi 0, %s83
      %s85 = sphi 0, %s83
      %s86 = sphi 0, %s85
      %s100 = sphi 0, %s86
      %s104 = sphi 0, %s104
      %s106 = sphi 0, %s104
      %s107 = sphi 0, %s106
      %s121 = sphi 0, %s107
      %s125 = sphi 0, %s125
      %s127 = sphi 0, %s125
      %s128 = sphi 0, %s127
      %s142 = sphi 0, %s128
      %s148 = sphi 0, %s150
      %s151 = sphi 0, %s148
      %s152 = sphi 0, %s151
      %s168 = sphi 0, %s152
      %s174 = sphi 0, %s176
      %s177 = sphi 0, %s174
      %s178 = sphi 0, %s177
      %s194 = sphi 0, %s178
      %s200 = sphi 0, %s202
      %s203 = sphi 0, %s200
      %s204 = sphi 0, %s203
      %s220 = sphi 0, %s204
      %s226 = sphi 0, %s228
      %s229 = sphi 0, %s226
      %s230 = sphi 0, %s229
      %s246 = sphi 0, %s230
    $region4: #{tpu_custom_call.1} parent=1 // loop_header_branch
      %31 = sbr.rel (%p29) target = $region8
    $region5: #{tpu_custom_call.1} parent=1 // loop_body
      %s33 = ssub.s32 %s28, 1
      %s34 = ssub.s32 %s28, 2
      %s35 = sadd.s32 %s28, 1
      %s36 = ssub.s32 %s28, %s35
      %p37 = scmp.eq.s32.totalorder %s36, 0
      %s39 = sadd.s32 %s38, 1
      %s40 = scalar_select %p37, %s38, %s39
      %p43 = pneg %p37
      %p44 = scmp.eq.s32.totalorder %s28, 1
      %p45 = por %p43, %p44
      %p46 = scmp.ne.s32.totalorder %s38, %s41
      %p47 = scmp.eq.s32.totalorder %s28, 0
      %p48 = por %p46, %p47
      %p49 = scmp.ne.s32.totalorder %s38, %s41
      %p50 = scmp.eq.s32.totalorder %s33, 1
      %p51 = por %p49, %p50
      %p52 = scmp.ne.s32.totalorder %s41, %s42
      %p53 = scmp.eq.s32.totalorder %s33, 0
      %p54 = por %p52, %p53
      %p55 = scmp.ne.s32.totalorder %s41, %s42
      %p56 = scmp.eq.s32.totalorder %s34, 1
      %p57 = por %p55, %p56
      %p59 = scmp.ne.s32.totalorder %s42, %s58
      %p60 = scmp.eq.s32.totalorder %s34, 0
      %p61 = por %p59, %p60
      %s63 = sadd.s32 %s62, 1
      %p66 = scmp.eq.s32.totalorder %s28, 1
      %p67 = scmp.ne.s32.totalorder %s62, %s64
      %p68 = scmp.eq.s32.totalorder %s28, 0
      %p69 = por %p67, %p68
      %p70 = scmp.ne.s32.totalorder %s62, %s64
      %p71 = scmp.eq.s32.totalorder %s33, 1
      %p72 = por %p70, %p71
      %p73 = scmp.ne.s32.totalorder %s64, %s65
      %p74 = scmp.eq.s32.totalorder %s33, 0
      %p75 = por %p73, %p74
      %p76 = scmp.ne.s32.totalorder %s64, %s65
      %p77 = scmp.eq.s32.totalorder %s34, 1
      %p78 = por %p76, %p77
      %p80 = scmp.ne.s32.totalorder %s65, %s79
      %p81 = scmp.eq.s32.totalorder %s34, 0
      %p82 = por %p80, %p81
      %s84 = sadd.s32 %s83, 1
      %p87 = scmp.eq.s32.totalorder %s28, 1
      %p88 = scmp.ne.s32.totalorder %s83, %s85
      %p89 = scmp.eq.s32.totalorder %s28, 0
      %p90 = por %p88, %p89
      %p91 = scmp.ne.s32.totalorder %s83, %s85
      %p92 = scmp.eq.s32.totalorder %s33, 1
      %p93 = por %p91, %p92
      %p94 = scmp.ne.s32.totalorder %s85, %s86
      %p95 = scmp.eq.s32.totalorder %s33, 0
      %p96 = por %p94, %p95
      %p97 = scmp.ne.s32.totalorder %s85, %s86
      %p98 = scmp.eq.s32.totalorder %s34, 1
      %p99 = por %p97, %p98
      %p101 = scmp.ne.s32.totalorder %s86, %s100
      %p102 = scmp.eq.s32.totalorder %s34, 0
      %p103 = por %p101, %p102
      %s105 = sadd.s32 %s104, 1
      %p108 = scmp.eq.s32.totalorder %s28, 1
      %p109 = scmp.ne.s32.totalorder %s104, %s106
      %p110 = scmp.eq.s32.totalorder %s28, 0
      %p111 = por %p109, %p110
      %p112 = scmp.ne.s32.totalorder %s104, %s106
      %p113 = scmp.eq.s32.totalorder %s33, 1
      %p114 = por %p112, %p113
      %p115 = scmp.ne.s32.totalorder %s106, %s107
      %p116 = scmp.eq.s32.totalorder %s33, 0
      %p117 = por %p115, %p116
      %p118 = scmp.ne.s32.totalorder %s106, %s107
      %p119 = scmp.eq.s32.totalorder %s34, 1
      %p120 = por %p118, %p119
      %p122 = scmp.ne.s32.totalorder %s107, %s121
      %p123 = scmp.eq.s32.totalorder %s34, 0
      %p124 = por %p122, %p123
      %s126 = sadd.s32 %s125, 1
      %p129 = scmp.eq.s32.totalorder %s28, 1
      %p130 = scmp.ne.s32.totalorder %s125, %s127
      %p131 = scmp.eq.s32.totalorder %s28, 0
      %p132 = por %p130, %p131
      %p133 = scmp.ne.s32.totalorder %s125, %s127
      %p134 = scmp.eq.s32.totalorder %s33, 1
      %p135 = por %p133, %p134
      %p136 = scmp.ne.s32.totalorder %s127, %s128
      %p137 = scmp.eq.s32.totalorder %s33, 0
      %p138 = por %p136, %p137
      %p139 = scmp.ne.s32.totalorder %s127, %s128
      %p140 = scmp.eq.s32.totalorder %s34, 1
      %p141 = por %p139, %p140
      %p143 = scmp.ne.s32.totalorder %s128, %s142
      %p144 = scmp.eq.s32.totalorder %s34, 0
      %p145 = por %p143, %p144
      %s146 = ssub.s32 %s28, %s35
      %p147 = scmp.eq.s32.totalorder %s146, 0
      %s149 = sadd.s32 %s148, 1
      %s150 = scalar_select %p147, %s148, %s149
      %p153 = pneg %p147
      %p154 = scmp.eq.s32.totalorder %s28, 1
      %p155 = por %p153, %p154
      %p156 = scmp.ne.s32.totalorder %s148, %s151
      %p157 = scmp.eq.s32.totalorder %s28, 0
      %p158 = por %p156, %p157
      %p159 = scmp.ne.s32.totalorder %s148, %s151
      %p160 = scmp.eq.s32.totalorder %s33, 1
      %p161 = por %p159, %p160
      %p162 = scmp.ne.s32.totalorder %s151, %s152
      %p163 = scmp.eq.s32.totalorder %s33, 0
      %p164 = por %p162, %p163
      %p165 = scmp.ne.s32.totalorder %s151, %s152
      %p166 = scmp.eq.s32.totalorder %s34, 1
      %p167 = por %p165, %p166
      %p169 = scmp.ne.s32.totalorder %s152, %s168
      %p170 = scmp.eq.s32.totalorder %s34, 0
      %p171 = por %p169, %p170
      %s172 = ssub.s32 %s28, %s35
      %p173 = scmp.eq.s32.totalorder %s172, 0
      %s175 = sadd.s32 %s174, 1
      %s176 = scalar_select %p173, %s174, %s175
      %p179 = pneg %p173
      %p180 = scmp.eq.s32.totalorder %s28, 1
      %p181 = por %p179, %p180
      %p182 = scmp.ne.s32.totalorder %s174, %s177
      %p183 = scmp.eq.s32.totalorder %s28, 0
      %p184 = por %p182, %p183
      %p185 = scmp.ne.s32.totalorder %s174, %s177
      %p186 = scmp.eq.s32.totalorder %s33, 1
      %p187 = por %p185, %p186
      %p188 = scmp.ne.s32.totalorder %s177, %s178
      %p189 = scmp.eq.s32.totalorder %s33, 0
      %p190 = por %p188, %p189
      %p191 = scmp.ne.s32.totalorder %s177, %s178
      %p192 = scmp.eq.s32.totalorder %s34, 1
      %p193 = por %p191, %p192
      %p195 = scmp.ne.s32.totalorder %s178, %s194
      %p196 = scmp.eq.s32.totalorder %s34, 0
      %p197 = por %p195, %p196
      %s198 = ssub.s32 %s28, %s35
      %p199 = scmp.eq.s32.totalorder %s198, 0
      %s201 = sadd.s32 %s200, 1
      %s202 = scalar_select %p199, %s200, %s201
      %p205 = pneg %p199
      %p206 = scmp.eq.s32.totalorder %s28, 1
      %p207 = por %p205, %p206
      %p208 = scmp.ne.s32.totalorder %s200, %s203
      %p209 = scmp.eq.s32.totalorder %s28, 0
      %p210 = por %p208, %p209
      %p211 = scmp.ne.s32.totalorder %s200, %s203
      %p212 = scmp.eq.s32.totalorder %s33, 1
      %p213 = por %p211, %p212
      %p214 = scmp.ne.s32.totalorder %s203, %s204
      %p215 = scmp.eq.s32.totalorder %s33, 0
      %p216 = por %p214, %p215
      %p217 = scmp.ne.s32.totalorder %s203, %s204
      %p218 = scmp.eq.s32.totalorder %s34, 1
      %p219 = por %p217, %p218
      %p221 = scmp.ne.s32.totalorder %s204, %s220
      %p222 = scmp.eq.s32.totalorder %s34, 0
      %p223 = por %p221, %p222
      %s224 = ssub.s32 %s28, %s35
      %p225 = scmp.eq.s32.totalorder %s224, 0
      %s227 = sadd.s32 %s226, 1
      %s228 = scalar_select %p225, %s226, %s227
      %p231 = pneg %p225
      %p232 = scmp.eq.s32.totalorder %s28, 1
      %p233 = por %p231, %p232
      %p234 = scmp.ne.s32.totalorder %s226, %s229
      %p235 = scmp.eq.s32.totalorder %s28, 0
      %p236 = por %p234, %p235
      %p237 = scmp.ne.s32.totalorder %s226, %s229
      %p238 = scmp.eq.s32.totalorder %s33, 1
      %p239 = por %p237, %p238
      %p240 = scmp.ne.s32.totalorder %s229, %s230
      %p241 = scmp.eq.s32.totalorder %s33, 0
      %p242 = por %p240, %p241
      %p243 = scmp.ne.s32.totalorder %s229, %s230
      %p244 = scmp.eq.s32.totalorder %s34, 1
      %p245 = por %p243, %p244
      %p247 = scmp.ne.s32.totalorder %s230, %s246
      %p248 = scmp.eq.s32.totalorder %s34, 0
      %p249 = por %p247, %p248
      %p250 = scmp.le.s32.totalorder 1, %s28
      %p251 = scmp.lt.s32.totalorder %s28, 3
      %p252 = pnand %p250, %p251
      %p253 = pneg %p252
      // Predicated region
      $region9: #{tpu_custom_call.1} parent=5 // pred_check
        _
      $region10: #{tpu_custom_call.1} parent=5 // pred_check_branch
        %255 = sbr.rel (%p252) target = $region12
      $region11: #{tpu_custom_call.1} parent=5 // pred_region
        %s256 = ssub.s32 %s28, 1
        // Predicated region
        $region13: #{tpu_custom_call.1} parent=11 // pred_check
          %p257 = pneg %p75
        $region14: #{tpu_custom_call.1} parent=11 // pred_check_branch
          %259 = sbr.rel (%p257) target = $region16
        $region15: #{tpu_custom_call.1} parent=11 // pred_region
          %s261 = ssub.s32 2048, 2048
          %262 = vsyncadd [#allocation6], %s261
          %s263 = sshll.u32 [#allocation5], 4
          %s264 = int_to_ptr.vmem [resolvable:$true] %s263
          %269 = dma.hbm_to_vmem [thread:$0]  %s1, 2048, %s264, [#allocation6], 128, 128, 8
        $region16: #{tpu_custom_call.1} parent=11 // pred_fallthru
          _
        // Predicated region
        $region17: #{tpu_custom_call.1} parent=11 // pred_check
          %p270 = pneg %p96
        $region18: #{tpu_custom_call.1} parent=11 // pred_check_branch
          %272 = sbr.rel (%p270) target = $region20
        $region19: #{tpu_custom_call.1} parent=11 // pred_region
          _
        $region20: #{tpu_custom_call.1} parent=11 // pred_fallthru
          _
        // Predicated region
        $region21: #{tpu_custom_call.1} parent=11 // pred_check
          %p273 = pneg %p117
        $region22: #{tpu_custom_call.1} parent=11 // pred_check_branch
          %275 = sbr.rel (%p273) target = $region24
        $region23: #{tpu_custom_call.1} parent=11 // pred_region
          %s277 = ssub.s32 4096, 4096
          %278 = vsyncadd [#allocation6], %s277
          %s279 = sshll.u32 [#allocation7], 4
          %s280 = int_to_ptr.vmem [resolvable:$true] %s279
          %285 = dma.hbm_to_vmem [thread:$0]  %s3, 4096, %s280, [#allocation6], 256, 256, 16
        $region24: #{tpu_custom_call.1} parent=11 // pred_fallthru
          _
        // Predicated region
        $region25: #{tpu_custom_call.1} parent=11 // pred_check
          %p286 = pneg %p138
        $region26: #{tpu_custom_call.1} parent=11 // pred_check_branch
          %288 = sbr.rel (%p286) target = $region28
        $region27: #{tpu_custom_call.1} parent=11 // pred_region
          _
        $region28: #{tpu_custom_call.1} parent=11 // pred_fallthru
          _
      $region12: #{tpu_custom_call.1} parent=5 // pred_fallthru
        _
      %p289 = scmp.lt.s32.totalorder %s28, 2
      // Predicated region
      $region29: #{tpu_custom_call.1} parent=5 // pred_check
        %p290 = pneg %p289
      $region30: #{tpu_custom_call.1} parent=5 // pred_check_branch
        %292 = sbr.rel (%p290) target = $region32
      $region31: #{tpu_custom_call.1} parent=5 // pred_region
        // Predicated region
        $region33: #{tpu_custom_call.1} parent=31 // pred_check
          %p293 = pneg %p48
        $region34: #{tpu_custom_call.1} parent=31 // pred_check_branch
          %295 = sbr.rel (%p293) target = $region36
        $region35: #{tpu_custom_call.1} parent=31 // pred_region
          %s296 = sand.u32 %s38, 1
          %s297 = scalar_lea.sflag [#allocation3], %s296
          %s298 = sand.u32 %s38, 1
          %s299 = smul.addr %s298, 32
          %s300 = scalar_lea.vmem [#allocation2], %s299
          %s301 = smul.u32 4, %s28
          %s303 = ssub.s32 512, 512
          %304 = vsyncadd %s297, %s303
          %s305 = smul.addr %s301, 128
          %s306 = scalar_lea.hbm %s0, %s305
          %s307 = sshll.u32 %s300, 4
          %s308 = int_to_ptr.vmem [resolvable:$true] %s307
          %313 = dma.hbm_to_vmem [thread:$0]  %s306, 512, %s308, %s297, 128, 128, 8
        $region36: #{tpu_custom_call.1} parent=31 // pred_fallthru
          _
        // Predicated region
        $region37: #{tpu_custom_call.1} parent=31 // pred_check
          %p314 = pneg %p158
        $region38: #{tpu_custom_call.1} parent=31 // pred_check_branch
          %316 = sbr.rel (%p314) target = $region40
        $region39: #{tpu_custom_call.1} parent=31 // pred_region
          %s317 = sand.u32 %s148, 1
          %s318 = scalar_lea.sflag [#allocation9], %s317
          %s319 = sand.u32 %s148, 1
          %s320 = smul.addr %s319, 32
          %s321 = scalar_lea.vmem [#allocation8], %s320
          %s322 = smul.u32 4, %s28
          %s324 = ssub.s32 512, 512
          %325 = vsyncadd %s318, %s324
          %s326 = smul.addr %s322, 128
          %s327 = scalar_lea.hbm %s5, %s326
          %s328 = sshll.u32 %s321, 4
          %s329 = int_to_ptr.vmem [resolvable:$true] %s328
          %334 = dma.hbm_to_vmem [thread:$0]  %s327, 512, %s329, %s318, 128, 128, 8
        $region40: #{tpu_custom_call.1} parent=31 // pred_fallthru
          _
      $region32: #{tpu_custom_call.1} parent=5 // pred_fallthru
        _
      %p335 = scmp.le.s32.totalorder 1, %s28
      %p336 = scmp.lt.s32.totalorder %s28, 3
      %p337 = pnand %p335, %p336
      %p338 = pneg %p337
      // Predicated region
      $region41: #{tpu_custom_call.1} parent=5 // pred_check
        _
      $region42: #{tpu_custom_call.1} parent=5 // pred_check_branch
        %340 = sbr.rel (%p337) target = $region44
      $region43: #{tpu_custom_call.1} parent=5 // pred_region
        %s341 = ssub.s32 %s28, 1
        %s342 = sand.u32 %s41, 1
        %s343 = scalar_lea.sflag [#allocation3], %s342
        %s344 = sand.u32 %s41, 1
        %s345 = smul.addr %s344, 32
        %s346 = scalar_lea.vmem [#allocation2], %s345
        // Predicated region
        $region45: #{tpu_custom_call.1} parent=43 // pred_check
          %p347 = pneg %p54
        $region46: #{tpu_custom_call.1} parent=43 // pred_check_branch
          %349 = sbr.rel (%p347) target = $region48
        $region47: #{tpu_custom_call.1} parent=43 // pred_region
          %350 = dma.done %s343, 512
        $region48: #{tpu_custom_call.1} parent=43 // pred_fallthru
          _
        // Predicated region
        $region49: #{tpu_custom_call.1} parent=43 // pred_check
          %p351 = pneg %p75
        $region50: #{tpu_custom_call.1} parent=43 // pred_check_branch
          %353 = sbr.rel (%p351) target = $region52
        $region51: #{tpu_custom_call.1} parent=43 // pred_region
          %354 = dma.done [#allocation6], 2048
        $region52: #{tpu_custom_call.1} parent=43 // pred_fallthru
          _
        // Predicated region
        $region53: #{tpu_custom_call.1} parent=43 // pred_check
          %p355 = pneg %p117
        $region54: #{tpu_custom_call.1} parent=43 // pred_check_branch
          %357 = sbr.rel (%p355) target = $region56
        $region55: #{tpu_custom_call.1} parent=43 // pred_region
          %358 = dma.done [#allocation6], 4096
        $region56: #{tpu_custom_call.1} parent=43 // pred_fallthru
          _
        %s359 = sand.u32 %s151, 1
        %s360 = scalar_lea.sflag [#allocation9], %s359
        %s361 = sand.u32 %s151, 1
        %s362 = smul.addr %s361, 32
        %s363 = scalar_lea.vmem [#allocation8], %s362
        // Predicated region
        $region57: #{tpu_custom_call.1} parent=43 // pred_check
          %p364 = pneg %p164
        $region58: #{tpu_custom_call.1} parent=43 // pred_check_branch
          %366 = sbr.rel (%p364) target = $region60
        $region59: #{tpu_custom_call.1} parent=43 // pred_region
          %367 = dma.done %s360, 512
        $region60: #{tpu_custom_call.1} parent=43 // pred_fallthru
          _
        %s368 = sand.u32 %s41, 1
        %s369 = scalar_lea.sflag [#allocation3], %s368
        %s370 = sand.u32 %s41, 1
        %s371 = smul.addr %s370, 32
        %s372 = scalar_lea.vmem [#allocation2], %s371
        %p373 = pneg %p54
        %p374 = pneg %p51
        %p375 = pneg %p75
        %p376 = pneg %p72
        %p377 = pneg %p96
        %p378 = pneg %p93
        %p379 = pneg %p117
        %p380 = pneg %p114
        %p381 = pneg %p138
        %p382 = pneg %p135
        %s383 = sand.u32 %s151, 1
        %s384 = scalar_lea.sflag [#allocation9], %s383
        %s385 = sand.u32 %s151, 1
        %s386 = smul.addr %s385, 32
        %s387 = scalar_lea.vmem [#allocation8], %s386
        %p388 = pneg %p164
        %p389 = pneg %p161
        %p390 = pneg %p190
        %p391 = pneg %p187
        %s392 = sand.u32 %s177, 1
        %s393 = scalar_lea.sflag [#allocation4], %s392
        %s394 = sand.u32 %s177, 1
        %s395 = smul.addr %s394, 32
        %s396 = scalar_lea.vmem [#allocation10], %s395
        %p397 = pneg %p216
        %p398 = pneg %p213
        %s399 = sand.u32 %s33, 1
        %s400 = scalar_lea.sflag [#allocation12], %s399
        %s401 = sand.u32 %s203, 1
        %s402 = smul.addr %s401, 32
        %s403 = scalar_lea.vmem [#allocation11], %s402
        %p404 = pneg %p242
        %p405 = pneg %p239
        %s406 = sand.u32 %s33, 1
        %s407 = scalar_lea.sflag [#allocation12], %s406
        %s408 = sand.u32 %s229, 1
        %s409 = smul.addr %s408, 32
        %s410 = scalar_lea.vmem [#allocation13], %s409
        %s411 = smul.u32 4, %s33
        %s412 = smul.u32 4, %s33
        %s413 = smul.u32 4, %s33
        %s414 = smul.u32 4, %s33
        %s415 = smul.u32 4, %s33
        %v416 = vld [vmem:[%s346] sm:$0xff]
        %v417 = vld [vmem:[%s346 + $0x8] sm:$0xff]
        %v418 = vld [vmem:[%s346 + $0x10] sm:$0xff]
        %v419 = vld [vmem:[%s346 + $0x18] sm:$0xff]
        %v420 = vld [vmem:[#allocation5] sm:$0xff]
        %v421 = vld [vmem:[#allocation5 + $0x8] sm:$0xff]
        %v422 = vld [vmem:[#allocation5 + $0x10] sm:$0xff]
        %v423 = vld [vmem:[#allocation5 + $0x18] sm:$0xff]
        %v424 = vld [vmem:[#allocation5 + $0x20] sm:$0xff]
        %v425 = vld [vmem:[#allocation5 + $0x28] sm:$0xff]
        %v426 = vld [vmem:[#allocation5 + $0x30] sm:$0xff]
        %v427 = vld [vmem:[#allocation5 + $0x38] sm:$0xff]
        %v428 = vld [vmem:[#allocation5 + $0x40] sm:$0xff]
        %v429 = vld [vmem:[#allocation5 + $0x48] sm:$0xff]
        %v430 = vld [vmem:[#allocation5 + $0x50] sm:$0xff]
        %v431 = vld [vmem:[#allocation5 + $0x58] sm:$0xff]
        %v432 = vld [vmem:[#allocation5 + $0x60] sm:$0xff]
        %v433 = vld [vmem:[#allocation5 + $0x68] sm:$0xff]
        %v434 = vld [vmem:[#allocation5 + $0x70] sm:$0xff]
        %v435 = vld [vmem:[#allocation5 + $0x78] sm:$0xff]
        %v436 = vld [vmem:[%s2] sm:$0x1]
        %v438 = vlaneseq
        %v439 = vshrl.u32 %v438, 7
        %v440 = vsub.s32 0, %v439
        %v441 = vrot.slane %v436, %v440
        %443 = vmatprep.subr.mxu0 0.0
        %444 = vmatpush1.msra.mxu0 %v420
        %445 = vmatprep.subr.mxu0 0.0
        %446 = vmatpush1.msra.mxu0 %v421
        %447 = vmatprep.subr.mxu0 0.0
        %448 = vmatpush1.msra.mxu0 %v422
        %449 = vmatprep.subr.mxu0 0.0
        %450 = vmatpush1.msra.mxu0 %v423
        %451 = vmatprep.subr.mxu0 0.0
        %452 = vmatpush1.msra.mxu0 %v424
        %453 = vmatprep.subr.mxu0 0.0
        %454 = vmatpush1.msra.mxu0 %v425
        %455 = vmatprep.subr.mxu0 0.0
        %456 = vmatpush1.msra.mxu0 %v426
        %457 = vmatprep.subr.mxu0 0.0
        %458 = vmatpush1.msra.mxu0 %v427
        %459 = vmatprep.subr.mxu0 0.0
        %460 = vmatpush1.msra.mxu0 %v428
        %461 = vmatprep.subr.mxu0 0.0
        %462 = vmatpush1.msra.mxu0 %v429
        %463 = vmatprep.subr.mxu0 0.0
        %464 = vmatpush1.msra.mxu0 %v430
        %465 = vmatprep.subr.mxu0 0.0
        %466 = vmatpush1.msra.mxu0 %v431
        %467 = vmatprep.subr.mxu0 0.0
        %468 = vmatpush1.msra.mxu0 %v432
        %469 = vmatprep.subr.mxu0 0.0
        %470 = vmatpush1.msra.mxu0 %v433
        %471 = vmatprep.subr.mxu0 0.0
        %472 = vmatpush1.msra.mxu0 %v434
        %473 = vmatprep.subr.mxu0 0.0
        %474 = vmatpush1.msra.mxu0 %v435
        %475 = vmatprep.subr.mxu0 0.0
        %476 = vmatpush1.msra.mxu0 0.0
        %477 = vmatprep.subr.mxu0 0.0
        %478 = vmatpush1.msra.mxu0 0.0
        %479 = vmatprep.subr.mxu0 0.0
        %480 = vmatpush1.msra.mxu0 0.0
        %481 = vmatprep.subr.mxu0 0.0
        %482 = vmatpush1.msra.mxu0 0.0
        %483 = vmatprep.subr.mxu0 0.0
        %484 = vmatpush1.msra.mxu0 0.0
        %485 = vmatprep.subr.mxu0 0.0
        %486 = vmatpush1.msra.mxu0 0.0
        %487 = vmatprep.subr.mxu0 0.0
        %488 = vmatpush1.msra.mxu0 0.0
        %489 = vmatprep.subr.mxu0 0.0
        %490 = vmatpush1.msra.mxu0 0.0
        %491 = vmatprep.subr.mxu0 0.0
        %492 = vmatpush1.msra.mxu0 0.0
        %493 = vmatprep.subr.mxu0 0.0
        %494 = vmatpush1.msra.mxu0 0.0
        %495 = vmatprep.subr.mxu0 0.0
        %496 = vmatpush1.msra.mxu0 0.0
        %497 = vmatprep.subr.mxu0 0.0
        %498 = vmatpush1.msra.mxu0 0.0
        %499 = vmatprep.subr.mxu0 0.0
        %500 = vmatpush1.msra.mxu0 0.0
        %501 = vmatprep.subr.mxu0 0.0
        %502 = vmatpush1.msra.mxu0 0.0
        %503 = vmatprep.subr.mxu0 0.0
        %504 = vmatpush1.msra.mxu0 0.0
        %505 = vmatprep.subr.mxu0 0.0
        %506 = vmatpush1.msra.mxu0 0.0
        %507 = vmatprep.mubr.f32.mxu0 0.0
        %508 = vmatmul.mubr.f32.gmra.mrb[0].mxu0 %v416
        %v509 = vpop.f32.mrb[0].mxu0
        %v510 = vadd.f32 %v441, %v509
        %v511 = vpop.f32.mrb[0].mxu0
        %512 = vmatprep.mubr.f32.mxu0 0.0
        %513 = vmatmul.mubr.f32.gmra.mrb[0].mxu0 %v417
        %v514 = vpop.f32.mrb[0].mxu0
        %v515 = vadd.f32 %v441, %v514
        %v516 = vpop.f32.mrb[0].mxu0
        %517 = vmatprep.mubr.f32.mxu0 0.0
        %518 = vmatmul.mubr.f32.gmra.mrb[0].mxu0 %v418
        %v519 = vpop.f32.mrb[0].mxu0
        %v520 = vadd.f32 %v441, %v519
        %v521 = vpop.f32.mrb[0].mxu0
        %522 = vmatprep.mubr.f32.mxu0 0.0
        %523 = vmatmul.mubr.f32.gmra.mrb[0].mxu0 %v419
        %v524 = vpop.f32.mrb[0].mxu0
        %v525 = vadd.f32 %v441, %v524
        %v526 = vpop.f32.mrb[0].mxu0
        %527 = vdwg.mxu0
        %v528 = vmax.f32 %v510, 0.0
        %v529 = vmax.f32 %v515, 0.0
        %v530 = vmax.f32 %v520, 0.0
        %v531 = vmax.f32 %v525, 0.0
        %v532 = vld [vmem:[#allocation7] sm:$0xff]
        %v533 = vld [vmem:[#allocation7 + $0x8] sm:$0xff]
        %v534 = vld [vmem:[#allocation7 + $0x10] sm:$0xff]
        %v535 = vld [vmem:[#allocation7 + $0x18] sm:$0xff]
        %v536 = vld [vmem:[#allocation7 + $0x20] sm:$0xff]
        %v537 = vld [vmem:[#allocation7 + $0x28] sm:$0xff]
        %v538 = vld [vmem:[#allocation7 + $0x30] sm:$0xff]
        %v539 = vld [vmem:[#allocation7 + $0x38] sm:$0xff]
        %v540 = vld [vmem:[#allocation7 + $0x40] sm:$0xff]
        %v541 = vld [vmem:[#allocation7 + $0x48] sm:$0xff]
        %v542 = vld [vmem:[#allocation7 + $0x50] sm:$0xff]
        %v543 = vld [vmem:[#allocation7 + $0x58] sm:$0xff]
        %v544 = vld [vmem:[#allocation7 + $0x60] sm:$0xff]
        %v545 = vld [vmem:[#allocation7 + $0x68] sm:$0xff]
        %v546 = vld [vmem:[#allocation7 + $0x70] sm:$0xff]
        %v547 = vld [vmem:[#allocation7 + $0x78] sm:$0xff]
        %v548 = vld [vmem:[#allocation7 + $0x80] sm:$0xff]
        %v549 = vld [vmem:[#allocation7 + $0x88] sm:$0xff]
        %v550 = vld [vmem:[#allocation7 + $0x90] sm:$0xff]
        %v551 = vld [vmem:[#allocation7 + $0x98] sm:$0xff]
        %v552 = vld [vmem:[#allocation7 + $0xa0] sm:$0xff]
        %v553 = vld [vmem:[#allocation7 + $0xa8] sm:$0xff]
        %v554 = vld [vmem:[#allocation7 + $0xb0] sm:$0xff]
        %v555 = vld [vmem:[#allocation7 + $0xb8] sm:$0xff]
        %v556 = vld [vmem:[#allocation7 + $0xc0] sm:$0xff]
        %v557 = vld [vmem:[#allocation7 + $0xc8] sm:$0xff]
        %v558 = vld [vmem:[#allocation7 + $0xd0] sm:$0xff]
        %v559 = vld [vmem:[#allocation7 + $0xd8] sm:$0xff]
        %v560 = vld [vmem:[#allocation7 + $0xe0] sm:$0xff]
        %v561 = vld [vmem:[#allocation7 + $0xe8] sm:$0xff]
        %v562 = vld [vmem:[#allocation7 + $0xf0] sm:$0xff]
        %v563 = vld [vmem:[#allocation7 + $0xf8] sm:$0xff]
        %v564 = vld [vmem:[%s4] sm:$0x3]
        %v566 = vlaneseq
        %v567 = vshrl.u32 %v566, 7
        %v568 = vsub.s32 0, %v567
        %v569 = vrot.slane %v564, %v568
        %v570 = vlaneseq
        %v571 = vshrl.u32 %v570, 7
        %v572 = vsub.s32 1, %v571
        %v573 = vrot.slane %v564, %v572
        %576 = vmatprep.subr.mxu0 %v533
        %577 = vmatpush1.msra.mxu0 %v532
        %578 = vmatprep.subr.mxu0 %v535
        %579 = vmatpush1.msra.mxu0 %v534
        %580 = vmatprep.subr.mxu0 %v537
        %581 = vmatpush1.msra.mxu0 %v536
        %582 = vmatprep.subr.mxu0 %v539
        %583 = vmatpush1.msra.mxu0 %v538
        %584 = vmatprep.subr.mxu0 %v541
        %585 = vmatpush1.msra.mxu0 %v540
        %586 = vmatprep.subr.mxu0 %v543
        %587 = vmatpush1.msra.mxu0 %v542
        %588 = vmatprep.subr.mxu0 %v545
        %589 = vmatpush1.msra.mxu0 %v544
        %590 = vmatprep.subr.mxu0 %v547
        %591 = vmatpush1.msra.mxu0 %v546
        %592 = vmatprep.subr.mxu0 %v549
        %593 = vmatpush1.msra.mxu0 %v548
        %594 = vmatprep.subr.mxu0 %v551
        %595 = vmatpush1.msra.mxu0 %v550
        %596 = vmatprep.subr.mxu0 %v553
        %597 = vmatpush1.msra.mxu0 %v552
        %598 = vmatprep.subr.mxu0 %v555
        %599 = vmatpush1.msra.mxu0 %v554
        %600 = vmatprep.subr.mxu0 %v557
        %601 = vmatpush1.msra.mxu0 %v556
        %602 = vmatprep.subr.mxu0 %v559
        %603 = vmatpush1.msra.mxu0 %v558
        %604 = vmatprep.subr.mxu0 %v561
        %605 = vmatpush1.msra.mxu0 %v560
        %606 = vmatprep.subr.mxu0 %v563
        %607 = vmatpush1.msra.mxu0 %v562
        %608 = vmatprep.subr.mxu0 0.0
        %609 = vmatpush1.msra.mxu0 0.0
        %610 = vmatprep.subr.mxu0 0.0
        %611 = vmatpush1.msra.mxu0 0.0
        %612 = vmatprep.subr.mxu0 0.0
        %613 = vmatpush1.msra.mxu0 0.0
        %614 = vmatprep.subr.mxu0 0.0
        %615 = vmatpush1.msra.mxu0 0.0
        %616 = vmatprep.subr.mxu0 0.0
        %617 = vmatpush1.msra.mxu0 0.0
        %618 = vmatprep.subr.mxu0 0.0
        %619 = vmatpush1.msra.mxu0 0.0
        %620 = vmatprep.subr.mxu0 0.0
        %621 = vmatpush1.msra.mxu0 0.0
        %622 = vmatprep.subr.mxu0 0.0
        %623 = vmatpush1.msra.mxu0 0.0
        %624 = vmatprep.subr.mxu0 0.0
        %625 = vmatpush1.msra.mxu0 0.0
        %626 = vmatprep.subr.mxu0 0.0
        %627 = vmatpush1.msra.mxu0 0.0
        %628 = vmatprep.subr.mxu0 0.0
        %629 = vmatpush1.msra.mxu0 0.0
        %630 = vmatprep.subr.mxu0 0.0
        %631 = vmatpush1.msra.mxu0 0.0
        %632 = vmatprep.subr.mxu0 0.0
        %633 = vmatpush1.msra.mxu0 0.0
        %634 = vmatprep.subr.mxu0 0.0
        %635 = vmatpush1.msra.mxu0 0.0
        %636 = vmatprep.subr.mxu0 0.0
        %637 = vmatpush1.msra.mxu0 0.0
        %638 = vmatprep.subr.mxu0 0.0
        %639 = vmatpush1.msra.mxu0 0.0
        %640 = vmatprep.mubr.f32.mxu0 0.0
        %641 = vmatmul.mubr.f32.gmra.mrb[0].mxu0 %v528
        %v642 = vpop.f32.mrb[0].mxu0
        %v643 = vadd.f32 %v569, %v642
        %v644 = vpop.f32.mrb[0].mxu0
        %v645 = vadd.f32 %v573, %v644
        %646 = vmatprep.mubr.f32.mxu0 0.0
        %647 = vmatmul.mubr.f32.gmra.mrb[0].mxu0 %v529
        %v648 = vpop.f32.mrb[0].mxu0
        %v649 = vadd.f32 %v569, %v648
        %v650 = vpop.f32.mrb[0].mxu0
        %v651 = vadd.f32 %v573, %v650
        %652 = vmatprep.mubr.f32.mxu0 0.0
        %653 = vmatmul.mubr.f32.gmra.mrb[0].mxu0 %v530
        %v654 = vpop.f32.mrb[0].mxu0
        %v655 = vadd.f32 %v569, %v654
        %v656 = vpop.f32.mrb[0].mxu0
        %v657 = vadd.f32 %v573, %v656
        %658 = vmatprep.mubr.f32.mxu0 0.0
        %659 = vmatmul.mubr.f32.gmra.mrb[0].mxu0 %v531
        %v660 = vpop.f32.mrb[0].mxu0
        %v661 = vadd.f32 %v569, %v660
        %v662 = vpop.f32.mrb[0].mxu0
        %v663 = vadd.f32 %v573, %v662
        %664 = vdwg.mxu0
        %v665 = vld [vmem:[%s363] sm:$0xff]
        %v666 = vld [vmem:[%s363 + $0x8] sm:$0xff]
        %v667 = vld [vmem:[%s363 + $0x10] sm:$0xff]
        %v668 = vld [vmem:[%s363 + $0x18] sm:$0xff]
        %v669 = vmul.f32 %v645, 0.5
        %v670 = vmul.f32 %v651, 0.5
        %v671 = vmul.f32 %v657, 0.5
        %v672 = vmul.f32 %v663, 0.5
        %v673 = vmul.f32 %v669, 1.442695
        %v674 = vpow.pop %v673
        %v675 = vmul.f32 %v670, 1.442695
        %v676 = vpow.pop %v675
        %v677 = vmul.f32 %v671, 1.442695
        %v678 = vpow.pop %v677
        %v679 = vmul.f32 %v672, 1.442695
        %v680 = vpow.pop %v679
        %v681 = vmul.f32 %v665, %v674
        %v682 = vmul.f32 %v666, %v676
        %v683 = vmul.f32 %v667, %v678
        %v684 = vmul.f32 %v668, %v680
        %v685 = vadd.f32 %v681, %v643
        %v686 = vadd.f32 %v682, %v649
        %v687 = vadd.f32 %v683, %v655
        %v688 = vadd.f32 %v684, %v661
        %689 = vst [vmem:[%s396] sm:$0xff] %v685
        %690 = vst [vmem:[%s396 + $0x8] sm:$0xff] %v686
        %691 = vst [vmem:[%s396 + $0x10] sm:$0xff] %v687
        %692 = vst [vmem:[%s396 + $0x18] sm:$0xff] %v688
        %693 = vst [vmem:[%s403] sm:$0xff] %v643
        %694 = vst [vmem:[%s403 + $0x8] sm:$0xff] %v649
        %695 = vst [vmem:[%s403 + $0x10] sm:$0xff] %v655
        %696 = vst [vmem:[%s403 + $0x18] sm:$0xff] %v661
        %697 = vst [vmem:[%s410] sm:$0xff] %v645
        %698 = vst [vmem:[%s410 + $0x8] sm:$0xff] %v651
        %699 = vst [vmem:[%s410 + $0x10] sm:$0xff] %v657
        %700 = vst [vmem:[%s410 + $0x18] sm:$0xff] %v663
        %s701 = sand.u32 %s177, 1
        %s702 = scalar_lea.sflag [#allocation4], %s701
        %s703 = sand.u32 %s177, 1
        %s704 = smul.addr %s703, 32
        %s705 = scalar_lea.vmem [#allocation10], %s704
        %s706 = sand.u32 %s33, 1
        %s707 = scalar_lea.sflag [#allocation12], %s706
        %s708 = sand.u32 %s203, 1
        %s709 = smul.addr %s708, 32
        %s710 = scalar_lea.vmem [#allocation11], %s709
        %s711 = sand.u32 %s33, 1
        %s712 = scalar_lea.sflag [#allocation12], %s711
        %s713 = sand.u32 %s229, 1
        %s714 = smul.addr %s713, 32
        %s715 = scalar_lea.vmem [#allocation13], %s714
        // Predicated region
        $region61: #{tpu_custom_call.1} parent=43 // pred_check
          %p716 = pneg %p187
        $region62: #{tpu_custom_call.1} parent=43 // pred_check_branch
          %718 = sbr.rel (%p716) target = $region64
        $region63: #{tpu_custom_call.1} parent=43 // pred_region
          %s719 = smul.u32 4, %s33
          %s721 = ssub.s32 512, 512
          %722 = vsyncadd %s702, %s721
          %s723 = smul.addr %s719, 128
          %s724 = scalar_lea.hbm %s6, %s723
          %s725 = sshll.u32 %s705, 4
          %s726 = int_to_ptr.vmem [resolvable:$true] %s725
          %731 = dma.vmem_to_hbm [thread:$0]  %s726, 512, %s724, %s702, 128, 128, 8
        $region64: #{tpu_custom_call.1} parent=43 // pred_fallthru
          _
        // Predicated region
        $region65: #{tpu_custom_call.1} parent=43 // pred_check
          %p732 = pneg %p213
        $region66: #{tpu_custom_call.1} parent=43 // pred_check_branch
          %734 = sbr.rel (%p732) target = $region68
        $region67: #{tpu_custom_call.1} parent=43 // pred_region
          %s735 = smul.u32 4, %s33
          %s737 = ssub.s32 512, 512
          %738 = vsyncadd %s707, %s737
          %s739 = smul.addr %s735, 128
          %s740 = scalar_lea.hbm %s7, %s739
          %s741 = sshll.u32 %s710, 4
          %s742 = int_to_ptr.vmem [resolvable:$true] %s741
          %747 = dma.vmem_to_hbm [thread:$0]  %s742, 512, %s740, %s707, 128, 128, 8
        $region68: #{tpu_custom_call.1} parent=43 // pred_fallthru
          _
        // Predicated region
        $region69: #{tpu_custom_call.1} parent=43 // pred_check
          %p748 = pneg %p239
        $region70: #{tpu_custom_call.1} parent=43 // pred_check_branch
          %750 = sbr.rel (%p748) target = $region72
        $region71: #{tpu_custom_call.1} parent=43 // pred_region
          %s751 = smul.u32 4, %s33
          %s753 = ssub.s32 512, 512
          %754 = vsyncadd %s712, %s753
          %s755 = smul.addr %s751, 128
          %s756 = scalar_lea.hbm %s8, %s755
          %s757 = sshll.u32 %s715, 4
          %s758 = int_to_ptr.vmem [resolvable:$true] %s757
          %763 = dma.vmem_to_hbm [thread:$0]  %s758, 512, %s756, %s712, 128, 128, 8
        $region72: #{tpu_custom_call.1} parent=43 // pred_fallthru
          _
      $region44: #{tpu_custom_call.1} parent=5 // pred_fallthru
        _
      %p764 = scmp.le.s32.totalorder 2, %s28
      // Predicated region
      $region73: #{tpu_custom_call.1} parent=5 // pred_check
        %p765 = pneg %p764
      $region74: #{tpu_custom_call.1} parent=5 // pred_check_branch
        %767 = sbr.rel (%p765) target = $region76
      $region75: #{tpu_custom_call.1} parent=5 // pred_region
        %s768 = ssub.s32 %s28, 2
        // Predicated region
        $region77: #{tpu_custom_call.1} parent=75 // pred_check
          %p769 = pneg %p193
        $region78: #{tpu_custom_call.1} parent=75 // pred_check_branch
          %771 = sbr.rel (%p769) target = $region80
        $region79: #{tpu_custom_call.1} parent=75 // pred_region
          %s772 = sand.u32 %s178, 1
          %s773 = scalar_lea.sflag [#allocation4], %s772
          %s774 = sand.u32 %s178, 1
          %s775 = smul.addr %s774, 32
          %s776 = scalar_lea.vmem [#allocation10], %s775
          %777 = dma.done %s773, 512
        $region80: #{tpu_custom_call.1} parent=75 // pred_fallthru
          _
        // Predicated region
        $region81: #{tpu_custom_call.1} parent=75 // pred_check
          %p778 = pneg %p219
        $region82: #{tpu_custom_call.1} parent=75 // pred_check_branch
          %780 = sbr.rel (%p778) target = $region84
        $region83: #{tpu_custom_call.1} parent=75 // pred_region
          %s781 = sand.u32 %s34, 1
          %s782 = scalar_lea.sflag [#allocation12], %s781
          %s783 = sand.u32 %s204, 1
          %s784 = smul.addr %s783, 32
          %s785 = scalar_lea.vmem [#allocation11], %s784
          %786 = dma.done %s782, 512
        $region84: #{tpu_custom_call.1} parent=75 // pred_fallthru
          _
        // Predicated region
        $region85: #{tpu_custom_call.1} parent=75 // pred_check
          %p787 = pneg %p245
        $region86: #{tpu_custom_call.1} parent=75 // pred_check_branch
          %789 = sbr.rel (%p787) target = $region88
        $region87: #{tpu_custom_call.1} parent=75 // pred_region
          %s790 = sand.u32 %s34, 1
          %s791 = scalar_lea.sflag [#allocation12], %s790
          %s792 = sand.u32 %s230, 1
          %s793 = smul.addr %s792, 32
          %s794 = scalar_lea.vmem [#allocation13], %s793
          %795 = dma.done %s791, 512
        $region88: #{tpu_custom_call.1} parent=75 // pred_fallthru
          _
      $region76: #{tpu_custom_call.1} parent=5 // pred_fallthru
        _
    $region6: #{tpu_custom_call.1} parent=1 // loop_footer
      %s32 = sadd.s32 1, %s28
    $region7: #{tpu_custom_call.1} parent=1 // loop_footer_branch
      %27 = sbr.rel target = $region3
    $region8: #{tpu_custom_call.1} parent=1 // loop_exit
      _
    %796 = vsyncpa [#allocation3], 1
    %s797 = scalar_lea.sflag [#allocation3], 1
    %798 = vsyncpa %s797, 1
    %799 = vsyncpa [#allocation6], 1
    %800 = vsyncpa [#allocation9], 1
    %s801 = scalar_lea.sflag [#allocation9], 1
    %802 = vsyncpa %s801, 1
    %803 = vsyncpa [#allocation4], 1
    %s804 = scalar_lea.sflag [#allocation4], 1
    %805 = vsyncpa %s804, 1
    %806 = vsyncpa [#allocation12], 1
    %s807 = scalar_lea.sflag [#allocation12], 1
    %808 = vsyncpa %s807, 1

// kernel: tpu_custom_call.1
$region0: #{tpu_custom_call.1}
  #allocation0 [shape = 'u32[]', space=smem, size = 0x4, offset = 0x4, fixed_abs, tag = 'smem constant byte address 0x4 - core index']
  #allocation1 [shape = 'u32[144,128]{1,0:T(1,128)}', space=vmem, size = 0x12000, scoped, tag = 'internal scratch']
  %s0 = inlined_call_operand.hbm [shape: f32[64,128], index: 0, kind: input, shape index: {}]
  %s1 = inlined_call_operand.hbm [shape: f32[128,128], index: 1, kind: input, shape index: {}]
  %s2 = inlined_call_operand.vmem [shape: f32[1,128], index: 2, kind: input, shape index: {}]
  %s3 = inlined_call_operand.hbm [shape: f32[128,256], index: 3, kind: input, shape index: {}]
  %s4 = inlined_call_operand.vmem [shape: f32[1,256], index: 4, kind: input, shape index: {}]
  %s5 = inlined_call_operand.hbm [shape: f32[64,128], index: 5, kind: input, shape index: {}]
  %s6 = inlined_call_operand.hbm [shape: f32[64,128], index: 6, kind: output, shape index: {0}]
  %s7 = inlined_call_operand.hbm [shape: f32[64,128], index: 7, kind: output, shape index: {1}]
  %s8 = inlined_call_operand.hbm [shape: f32[64,128], index: 8, kind: output, shape index: {2}]
  %9 = xla_tuple %s6, %s7, %s8
  %s10 = sld [smem:[#allocation0]]
  $region89: #{tpu_custom_call.1} parent=0
    _
  %s12 = ssub.s32 1, %s10
  %s13 = scalar_select 0, %s12, %s10
  $region1: #{tpu_custom_call.1} parent=0
    #allocation2 [shape = 'u8[32768]{0}', space=vmem, size = 0x8000, scoped, tag = 'input window, operand 0']
    #allocation3 [shape = 's32[2]{0}', space=sflag, size = 0x8, scoped, tag = 'scoped memory for tpu_custom_call.1']
    #allocation4 [shape = 's32[2]{0}', space=sflag, size = 0x8, scoped, tag = 'scoped memory for tpu_custom_call.1']
    #allocation5 [shape = 'u8[65536]{0}', space=vmem, size = 0x10000, scoped, tag = 'input window, operand 1, single buffered']
    #allocation6 [shape = 's32[1]{0}', space=sflag, size = 0x4, scoped, tag = 'scoped memory for tpu_custom_call.1']
    #allocation7 [shape = 'u8[131072]{0}', space=vmem, size = 0x20000, scoped, tag = 'input window, operand 3, single buffered']
    #allocation8 [shape = 'u8[32768]{0}', space=vmem, size = 0x8000, scoped, tag = 'input window, operand 5']
    #allocation9 [shape = 's32[2]{0}', space=sflag, size = 0x8, scoped, tag = 'scoped memory for tpu_custom_call.1']
    #allocation10 [shape = 'u8[32768]{0}', space=vmem, size = 0x8000, scoped, tag = 'output window, operand 0']
    #allocation11 [shape = 'u8[32768]{0}', space=vmem, size = 0x8000, scoped, tag = 'output window, operand 1']
    #allocation12 [shape = 's32[2]{0}', space=sflag, size = 0x8, scoped, tag = 'scoped memory for tpu_custom_call.1']
    #allocation13 [shape = 'u8[32768]{0}', space=vmem, size = 0x8000, scoped, tag = 'output window, operand 2']
    %14 = vsyncpa [#allocation3], 0
    %s15 = scalar_lea.sflag [#allocation3], 1
    %16 = vsyncpa %s15, 0
    %17 = vsyncpa [#allocation6], 0
    %18 = vsyncpa [#allocation9], 0
    %s19 = scalar_lea.sflag [#allocation9], 1
    %20 = vsyncpa %s19, 0
    %21 = vsyncpa [#allocation4], 0
    %s22 = scalar_lea.sflag [#allocation4], 1
    %23 = vsyncpa %s22, 0
    %24 = vsyncpa [#allocation12], 0
    %s25 = scalar_lea.sflag [#allocation12], 1
    %26 = vsyncpa %s25, 0
    loop: start=0, step=1, limit=4
    $region2: #{tpu_custom_call.1} parent=1 // loop_pre_header
      _
    $region3: #{tpu_custom_call.1} parent=1 // loop_header
      %s28 = sphi 0, %s32
      %p29 = scmp.ge.s32.totalorder %s28, 4
      %s38 = sphi 0, %s40
      %s41 = sphi 0, %s38
      %s42 = sphi 0, %s41
      %s58 = sphi 0, %s42
      %s62 = sphi 0, %s62
      %s64 = sphi 0, %s62
      %s65 = sphi 0, %s64
      %s79 = sphi 0, %s65
      %s83 = sphi 0, %s83
      %s85 = sphi 0, %s83
      %s86 = sphi 0, %s85
      %s100 = sphi 0, %s86
      %s104 = sphi 0, %s104
      %s106 = sphi 0, %s104
      %s107 = sphi 0, %s106
      %s121 = sphi 0, %s107
      %s125 = sphi 0, %s125
      %s127 = sphi 0, %s125
      %s128 = sphi 0, %s127
      %s142 = sphi 0, %s128
      %s148 = sphi 0, %s150
      %s151 = sphi 0, %s148
      %s152 = sphi 0, %s151
      %s168 = sphi 0, %s152
      %s174 = sphi 0, %s176
      %s177 = sphi 0, %s174
      %s178 = sphi 0, %s177
      %s194 = sphi 0, %s178
      %s200 = sphi 0, %s202
      %s203 = sphi 0, %s200
      %s204 = sphi 0, %s203
      %s220 = sphi 0, %s204
      %s226 = sphi 0, %s228
      %s229 = sphi 0, %s226
      %s230 = sphi 0, %s229
      %s246 = sphi 0, %s230
    $region4: #{tpu_custom_call.1} parent=1 // loop_header_branch
      %31 = sbr.rel (%p29) target = $region8
    $region5: #{tpu_custom_call.1} parent=1 // loop_body
      %s33 = ssub.s32 %s28, 1
      %s34 = ssub.s32 %s28, 2
      %s35 = sadd.s32 %s28, 1
      %s36 = ssub.s32 %s28, %s35
      %p37 = scmp.eq.s32.totalorder %s36, 0
      %s39 = sadd.s32 %s38, 1
      %s40 = scalar_select %p37, %s38, %s39
      %p43 = pneg %p37
      %p44 = scmp.eq.s32.totalorder %s28, 1
      %p45 = por %p43, %p44
      %p46 = scmp.ne.s32.totalorder %s38, %s41
      %p47 = scmp.eq.s32.totalorder %s28, 0
      %p48 = por %p46, %p47
      %p49 = scmp.ne.s32.totalorder %s38, %s41
      %p50 = scmp.eq.s32.totalorder %s33, 1
      %p51 = por %p49, %p50
      %p52 = scmp.ne.s32.totalorder %s41, %s42
      %p53 = scmp.eq.s32.totalorder %s33, 0
      %p54 = por %p52, %p53
      %p55 = scmp.ne.s32.totalorder %s41, %s42
      %p56 = scmp.eq.s32.totalorder %s34, 1
      %p57 = por %p55, %p56
      %p59 = scmp.ne.s32.totalorder %s42, %s58
      %p60 = scmp.eq.s32.totalorder %s34, 0
      %p61 = por %p59, %p60
      %s63 = sadd.s32 %s62, 1
      %p66 = scmp.eq.s32.totalorder %s28, 1
      %p67 = scmp.ne.s32.totalorder %s62, %s64
      %p68 = scmp.eq.s32.totalorder %s28, 0
      %p69 = por %p67, %p68
      %p70 = scmp.ne.s32.totalorder %s62, %s64
      %p71 = scmp.eq.s32.totalorder %s33, 1
      %p72 = por %p70, %p71
      %p73 = scmp.ne.s32.totalorder %s64, %s65
      %p74 = scmp.eq.s32.totalorder %s33, 0
      %p75 = por %p73, %p74
      %p76 = scmp.ne.s32.totalorder %s64, %s65
      %p77 = scmp.eq.s32.totalorder %s34, 1
      %p78 = por %p76, %p77
      %p80 = scmp.ne.s32.totalorder %s65, %s79
      %p81 = scmp.eq.s32.totalorder %s34, 0
      %p82 = por %p80, %p81
      %s84 = sadd.s32 %s83, 1
      %p87 = scmp.eq.s32.totalorder %s28, 1
      %p88 = scmp.ne.s32.totalorder %s83, %s85
      %p89 = scmp.eq.s32.totalorder %s28, 0
      %p90 = por %p88, %p89
      %p91 = scmp.ne.s32.totalorder %s83, %s85
      %p92 = scmp.eq.s32.totalorder %s33, 1
      %p93 = por %p91, %p92
      %p94 = scmp.ne.s32.totalorder %s85, %s86
      %p95 = scmp.eq.s32.totalorder %s33, 0
      %p96 = por %p94, %p95
      %p97 = scmp.ne.s32.totalorder %s85, %s86
      %p98 = scmp.eq.s32.totalorder %s34, 1
      %p99 = por %p97, %p98
      %p101 = scmp.ne.s32.totalorder %s86, %s100
      %p102 = scmp.eq.s32.totalorder %s34, 0
      %p103 = por %p101, %p102
      %s105 = sadd.s32 %s104, 1
      %p108 = scmp.eq.s32.totalorder %s28, 1
      %p109 = scmp.ne.s32.totalorder %s104, %s106
      %p110 = scmp.eq.s32.totalorder %s28, 0
      %p111 = por %p109, %p110
      %p112 = scmp.ne.s32.totalorder %s104, %s106
      %p113 = scmp.eq.s32.totalorder %s33, 1
      %p114 = por %p112, %p113
      %p115 = scmp.ne.s32.totalorder %s106, %s107
      %p116 = scmp.eq.s32.totalorder %s33, 0
      %p117 = por %p115, %p116
      %p118 = scmp.ne.s32.totalorder %s106, %s107
      %p119 = scmp.eq.s32.totalorder %s34, 1
      %p120 = por %p118, %p119
      %p122 = scmp.ne.s32.totalorder %s107, %s121
      %p123 = scmp.eq.s32.totalorder %s34, 0
      %p124 = por %p122, %p123
      %s126 = sadd.s32 %s125, 1
      %p129 = scmp.eq.s32.totalorder %s28, 1
      %p130 = scmp.ne.s32.totalorder %s125, %s127
      %p131 = scmp.eq.s32.totalorder %s28, 0
      %p132 = por %p130, %p131
      %p133 = scmp.ne.s32.totalorder %s125, %s127
      %p134 = scmp.eq.s32.totalorder %s33, 1
      %p135 = por %p133, %p134
      %p136 = scmp.ne.s32.totalorder %s127, %s128
      %p137 = scmp.eq.s32.totalorder %s33, 0
      %p138 = por %p136, %p137
      %p139 = scmp.ne.s32.totalorder %s127, %s128
      %p140 = scmp.eq.s32.totalorder %s34, 1
      %p141 = por %p139, %p140
      %p143 = scmp.ne.s32.totalorder %s128, %s142
      %p144 = scmp.eq.s32.totalorder %s34, 0
      %p145 = por %p143, %p144
      %s146 = ssub.s32 %s28, %s35
      %p147 = scmp.eq.s32.totalorder %s146, 0
      %s149 = sadd.s32 %s148, 1
      %s150 = scalar_select %p147, %s148, %s149
      %p153 = pneg %p147
      %p154 = scmp.eq.s32.totalorder %s28, 1
      %p155 = por %p153, %p154
      %p156 = scmp.ne.s32.totalorder %s148, %s151
      %p157 = scmp.eq.s32.totalorder %s28, 0
      %p158 = por %p156, %p157
      %p159 = scmp.ne.s32.totalorder %s148, %s151
      %p160 = scmp.eq.s32.totalorder %s33, 1
      %p161 = por %p159, %p160
      %p162 = scmp.ne.s32.totalorder %s151, %s152
      %p163 = scmp.eq.s32.totalorder %s33, 0
      %p164 = por %p162, %p163
      %p165 = scmp.ne.s32.totalorder %s151, %s152
      %p166 = scmp.eq.s32.totalorder %s34, 1
      %p167 = por %p165, %p166
      %p169 = scmp.ne.s32.totalorder %s152, %s168
      %p170 = scmp.eq.s32.totalorder %s34, 0
      %p171 = por %p169, %p170
      %s172 = ssub.s32 %s28, %s35
      %p173 = scmp.eq.s32.totalorder %s172, 0
      %s175 = sadd.s32 %s174, 1
      %s176 = scalar_select %p173, %s174, %s175
      %p179 = pneg %p173
      %p180 = scmp.eq.s32.totalorder %s28, 1
      %p181 = por %p179, %p180
      %p182 = scmp.ne.s32.totalorder %s174, %s177
      %p183 = scmp.eq.s32.totalorder %s28, 0
      %p184 = por %p182, %p183
      %p185 = scmp.ne.s32.totalorder %s174, %s177
      %p186 = scmp.eq.s32.totalorder %s33, 1
      %p187 = por %p185, %p186
      %p188 = scmp.ne.s32.totalorder %s177, %s178
      %p189 = scmp.eq.s32.totalorder %s33, 0
      %p190 = por %p188, %p189
      %p191 = scmp.ne.s32.totalorder %s177, %s178
      %p192 = scmp.eq.s32.totalorder %s34, 1
      %p193 = por %p191, %p192
      %p195 = scmp.ne.s32.totalorder %s178, %s194
      %p196 = scmp.eq.s32.totalorder %s34, 0
      %p197 = por %p195, %p196
      %s198 = ssub.s32 %s28, %s35
      %p199 = scmp.eq.s32.totalorder %s198, 0
      %s201 = sadd.s32 %s200, 1
      %s202 = scalar_select %p199, %s200, %s201
      %p205 = pneg %p199
      %p206 = scmp.eq.s32.totalorder %s28, 1
      %p207 = por %p205, %p206
      %p208 = scmp.ne.s32.totalorder %s200, %s203
      %p209 = scmp.eq.s32.totalorder %s28, 0
      %p210 = por %p208, %p209
      %p211 = scmp.ne.s32.totalorder %s200, %s203
      %p212 = scmp.eq.s32.totalorder %s33, 1
      %p213 = por %p211, %p212
      %p214 = scmp.ne.s32.totalorder %s203, %s204
      %p215 = scmp.eq.s32.totalorder %s33, 0
      %p216 = por %p214, %p215
      %p217 = scmp.ne.s32.totalorder %s203, %s204
      %p218 = scmp.eq.s32.totalorder %s34, 1
      %p219 = por %p217, %p218
      %p221 = scmp.ne.s32.totalorder %s204, %s220
      %p222 = scmp.eq.s32.totalorder %s34, 0
      %p223 = por %p221, %p222
      %s224 = ssub.s32 %s28, %s35
      %p225 = scmp.eq.s32.totalorder %s224, 0
      %s227 = sadd.s32 %s226, 1
      %s228 = scalar_select %p225, %s226, %s227
      %p231 = pneg %p225
      %p232 = scmp.eq.s32.totalorder %s28, 1
      %p233 = por %p231, %p232
      %p234 = scmp.ne.s32.totalorder %s226, %s229
      %p235 = scmp.eq.s32.totalorder %s28, 0
      %p236 = por %p234, %p235
      %p237 = scmp.ne.s32.totalorder %s226, %s229
      %p238 = scmp.eq.s32.totalorder %s33, 1
      %p239 = por %p237, %p238
      %p240 = scmp.ne.s32.totalorder %s229, %s230
      %p241 = scmp.eq.s32.totalorder %s33, 0
      %p242 = por %p240, %p241
      %p243 = scmp.ne.s32.totalorder %s229, %s230
      %p244 = scmp.eq.s32.totalorder %s34, 1
      %p245 = por %p243, %p244
      %p247 = scmp.ne.s32.totalorder %s230, %s246
      %p248 = scmp.eq.s32.totalorder %s34, 0
      %p249 = por %p247, %p248
      %p250 = scmp.le.s32.totalorder 1, %s28
      %p251 = scmp.lt.s32.totalorder %s28, 3
      %p252 = pnand %p250, %p251
      %p253 = pneg %p252
      // Predicated region
      $region9: #{tpu_custom_call.1} parent=5 // pred_check
        _
      $region10: #{tpu_custom_call.1} parent=5 // pred_check_branch
        %255 = sbr.rel (%p252) target = $region12
      $region11: #{tpu_custom_call.1} parent=5 // pred_region
        %s256 = ssub.s32 %s28, 1
        // Predicated region
        $region13: #{tpu_custom_call.1} parent=11 // pred_check
          %p257 = pneg %p75
        $region14: #{tpu_custom_call.1} parent=11 // pred_check_branch
          %259 = sbr.rel (%p257) target = $region16
        $region15: #{tpu_custom_call.1} parent=11 // pred_region
          %s261 = ssub.s32 2048, 2048
          %262 = vsyncadd [#allocation6], %s261
          %s263 = sshll.u32 [#allocation5], 4
          %s264 = int_to_ptr.vmem [resolvable:$true] %s263
          %269 = dma.hbm_to_vmem [thread:$0]  %s1, 2048, %s264, [#allocation6], 128, 128, 8
        $region16: #{tpu_custom_call.1} parent=11 // pred_fallthru
          _
        // Predicated region
        $region17: #{tpu_custom_call.1} parent=11 // pred_check
          %p270 = pneg %p96
        $region18: #{tpu_custom_call.1} parent=11 // pred_check_branch
          %272 = sbr.rel (%p270) target = $region20
        $region19: #{tpu_custom_call.1} parent=11 // pred_region
          _
        $region20: #{tpu_custom_call.1} parent=11 // pred_fallthru
          _
        // Predicated region
        $region21: #{tpu_custom_call.1} parent=11 // pred_check
          %p273 = pneg %p117
        $region22: #{tpu_custom_call.1} parent=11 // pred_check_branch
          %275 = sbr.rel (%p273) target = $region24
        $region23: #{tpu_custom_call.1} parent=11 // pred_region
          %s277 = ssub.s32 4096, 4096
          %278 = vsyncadd [#allocation6], %s277
          %s279 = sshll.u32 [#allocation7], 4
          %s280 = int_to_ptr.vmem [resolvable:$true] %s279
          %285 = dma.hbm_to_vmem [thread:$0]  %s3, 4096, %s280, [#allocation6], 256, 256, 16
        $region24: #{tpu_custom_call.1} parent=11 // pred_fallthru
          _
        // Predicated region
        $region25: #{tpu_custom_call.1} parent=11 // pred_check
          %p286 = pneg %p138
        $region26: #{tpu_custom_call.1} parent=11 // pred_check_branch
          %288 = sbr.rel (%p286) target = $region28
        $region27: #{tpu_custom_call.1} parent=11 // pred_region
          _
        $region28: #{tpu_custom_call.1} parent=11 // pred_fallthru
          _
      $region12: #{tpu_custom_call.1} parent=5 // pred_fallthru
        _
      %p289 = scmp.lt.s32.totalorder %s28, 2
      // Predicated region
      $region29: #{tpu_custom_call.1} parent=5 // pred_check
        %p290 = pneg %p289
      $region30: #{tpu_custom_call.1} parent=5 // pred_check_branch
        %292 = sbr.rel (%p290) target = $region32
      $region31: #{tpu_custom_call.1} parent=5 // pred_region
        // Predicated region
        $region33: #{tpu_custom_call.1} parent=31 // pred_check
          %p293 = pneg %p48
        $region34: #{tpu_custom_call.1} parent=31 // pred_check_branch
          %295 = sbr.rel (%p293) target = $region36
        $region35: #{tpu_custom_call.1} parent=31 // pred_region
          %s296 = sand.u32 %s38, 1
          %s297 = scalar_lea.sflag [#allocation3], %s296
          %s298 = sand.u32 %s38, 1
          %s299 = smul.addr %s298, 32
          %s300 = scalar_lea.vmem [#allocation2], %s299
          %s301 = smul.u32 4, %s28
          %s303 = ssub.s32 512, 512
          %304 = vsyncadd %s297, %s303
          %s305 = smul.addr %s301, 128
          %s306 = scalar_lea.hbm %s0, %s305
          %s307 = sshll.u32 %s300, 4
          %s308 = int_to_ptr.vmem [resolvable:$true] %s307
          %313 = dma.hbm_to_vmem [thread:$0]  %s306, 512, %s308, %s297, 128, 128, 8
        $region36: #{tpu_custom_call.1} parent=31 // pred_fallthru
          _
        // Predicated region
        $region37: #{tpu_custom_call.1} parent=31 // pred_check
          %p314 = pneg %p158
        $region38: #{tpu_custom_call.1} parent=31 // pred_check_branch
          %316 = sbr.rel (%p314) target = $region40
        $region39: #{tpu_custom_call.1} parent=31 // pred_region
          %s317 = sand.u32 %s148, 1
          %s318 = scalar_lea.sflag [#allocation9], %s317
          %s319 = sand.u32 %s148, 1
          %s320 = smul.addr %s319, 32
          %s321 = scalar_lea.vmem [#allocation8], %s320
          %s322 = smul.u32 4, %s28
          %s324 = ssub.s32 512, 512
          %325 = vsyncadd %s318, %s324
          %s326 = smul.addr %s322, 128
          %s327 = scalar_lea.hbm %s5, %s326
          %s328 = sshll.u32 %s321, 4
          %s329 = int_to_ptr.vmem [resolvable:$true] %s328
          %334 = dma.hbm_to_vmem [thread:$0]  %s327, 512, %s329, %s318, 128, 128, 8
        $region40: #{tpu_custom_call.1} parent=31 // pred_fallthru
          _
      $region32: #{tpu_custom_call.1} parent=5 // pred_fallthru
        _
      %p335 = scmp.le.s32.totalorder 1, %s28
      %p336 = scmp.lt.s32.totalorder %s28, 3
      %p337 = pnand %p335, %p336
      %p338 = pneg %p337
      // Predicated region
      $region41: #{tpu_custom_call.1} parent=5 // pred_check
        _
      $region42: #{tpu_custom_call.1} parent=5 // pred_check_branch
        %340 = sbr.rel (%p337) target = $region44
      $region43: #{tpu_custom_call.1} parent=5 // pred_region
        %s341 = ssub.s32 %s28, 1
        %s342 = sand.u32 %s41, 1
        %s343 = scalar_lea.sflag [#allocation3], %s342
        %s344 = sand.u32 %s41, 1
        %s345 = smul.addr %s344, 32
        %s346 = scalar_lea.vmem [#allocation2], %s345
        // Predicated region
        $region45: #{tpu_custom_call.1} parent=43 // pred_check
          %p347 = pneg %p54
        $region46: #{tpu_custom_call.1} parent=43 // pred_check_branch
          %349 = sbr.rel (%p347) target = $region48
        $region47: #{tpu_custom_call.1} parent=43 // pred_region
          %350 = dma.done %s343, 512
        $region48: #{tpu_custom_call.1} parent=43 // pred_fallthru
          _
        // Predicated region
        $region49: #{tpu_custom_call.1} parent=43 // pred_check
          %p351 = pneg %p75
        $region50: #{tpu_custom_call.1} parent=43 // pred_check_branch
          %353 = sbr.rel (%p351) target = $region52
        $region51: #{tpu_custom_call.1} parent=43 // pred_region
          %354 = dma.done [#allocation6], 2048
        $region52: #{tpu_custom_call.1} parent=43 // pred_fallthru
          _
        // Predicated region
        $region53: #{tpu_custom_call.1} parent=43 // pred_check
          %p355 = pneg %p117
        $region54: #{tpu_custom_call.1} parent=43 // pred_check_branch
          %357 = sbr.rel (%p355) target = $region56
        $region55: #{tpu_custom_call.1} parent=43 // pred_region
          %358 = dma.done [#allocation6], 4096
        $region56: #{tpu_custom_call.1} parent=43 // pred_fallthru
          _
        %s359 = sand.u32 %s151, 1
        %s360 = scalar_lea.sflag [#allocation9], %s359
        %s361 = sand.u32 %s151, 1
        %s362 = smul.addr %s361, 32
        %s363 = scalar_lea.vmem [#allocation8], %s362
        // Predicated region
        $region57: #{tpu_custom_call.1} parent=43 // pred_check
          %p364 = pneg %p164
        $region58: #{tpu_custom_call.1} parent=43 // pred_check_branch
          %366 = sbr.rel (%p364) target = $region60
        $region59: #{tpu_custom_call.1} parent=43 // pred_region
          %367 = dma.done %s360, 512
        $region60: #{tpu_custom_call.1} parent=43 // pred_fallthru
          _
        %s368 = sand.u32 %s41, 1
        %s369 = scalar_lea.sflag [#allocation3], %s368
        %s370 = sand.u32 %s41, 1
        %s371 = smul.addr %s370, 32
        %s372 = scalar_lea.vmem [#allocation2], %s371
        %p373 = pneg %p54
        %p374 = pneg %p51
        %p375 = pneg %p75
        %p376 = pneg %p72
        %p377 = pneg %p96
        %p378 = pneg %p93
        %p379 = pneg %p117
        %p380 = pneg %p114
        %p381 = pneg %p138
        %p382 = pneg %p135
        %s383 = sand.u32 %s151, 1
        %s384 = scalar_lea.sflag [#allocation9], %s383
        %s385 = sand.u32 %s151, 1
        %s386 = smul.addr %s385, 32
        %s387 = scalar_lea.vmem [#allocation8], %s386
        %p388 = pneg %p164
        %p389 = pneg %p161
        %p390 = pneg %p190
        %p391 = pneg %p187
        %s392 = sand.u32 %s177, 1
        %s393 = scalar_lea.sflag [#allocation4], %s392
        %s394 = sand.u32 %s177, 1
        %s395 = smul.addr %s394, 32
        %s396 = scalar_lea.vmem [#allocation10], %s395
        %p397 = pneg %p216
        %p398 = pneg %p213
        %s399 = sand.u32 %s33, 1
        %s400 = scalar_lea.sflag [#allocation12], %s399
        %s401 = sand.u32 %s203, 1
        %s402 = smul.addr %s401, 32
        %s403 = scalar_lea.vmem [#allocation11], %s402
        %p404 = pneg %p242
        %p405 = pneg %p239
        %s406 = sand.u32 %s33, 1
        %s407 = scalar_lea.sflag [#allocation12], %s406
        %s408 = sand.u32 %s229, 1
        %s409 = smul.addr %s408, 32
        %s410 = scalar_lea.vmem [#allocation13], %s409
        %s411 = smul.u32 4, %s33
        %s412 = smul.u32 4, %s33
        %s413 = smul.u32 4, %s33
        %s414 = smul.u32 4, %s33
        %s415 = smul.u32 4, %s33
        %v416 = vld [vmem:[%s346] sm:$0xff]
        %v417 = vld [vmem:[%s346 + $0x8] sm:$0xff]
        %v418 = vld [vmem:[%s346 + $0x10] sm:$0xff]
        %v419 = vld [vmem:[%s346 + $0x18] sm:$0xff]
        %v420 = vld [vmem:[#allocation5] sm:$0xff]
        %v421 = vld [vmem:[#allocation5 + $0x8] sm:$0xff]
        %v422 = vld [vmem:[#allocation5 + $0x10] sm:$0xff]
        %v423 = vld [vmem:[#allocation5 + $0x18] sm:$0xff]
        %v424 = vld [vmem:[#allocation5 + $0x20] sm:$0xff]
        %v425 = vld [vmem:[#allocation5 + $0x28] sm:$0xff]
        %v426 = vld [vmem:[#allocation5 + $0x30] sm:$0xff]
        %v427 = vld [vmem:[#allocation5 + $0x38] sm:$0xff]
        %v428 = vld [vmem:[#allocation5 + $0x40] sm:$0xff]
        %v429 = vld [vmem:[#allocation5 + $0x48] sm:$0xff]
        %v430 = vld [vmem:[#allocation5 + $0x50] sm:$0xff]
        %v431 = vld [vmem:[#allocation5 + $0x58] sm:$0xff]
        %v432 = vld [vmem:[#allocation5 + $0x60] sm:$0xff]
        %v433 = vld [vmem:[#allocation5 + $0x68] sm:$0xff]
        %v434 = vld [vmem:[#allocation5 + $0x70] sm:$0xff]
        %v435 = vld [vmem:[#allocation5 + $0x78] sm:$0xff]
        %v436 = vld [vmem:[%s2] sm:$0x1]
        %v438 = vlaneseq
        %v439 = vshrl.u32 %v438, 7
        %v440 = vsub.s32 0, %v439
        %v441 = vrot.slane %v436, %v440
        %443 = vmatprep.subr.mxu0 0.0
        %444 = vmatpush1.msra.mxu0 %v420
        %445 = vmatprep.subr.mxu0 0.0
        %446 = vmatpush1.msra.mxu0 %v421
        %447 = vmatprep.subr.mxu0 0.0
        %448 = vmatpush1.msra.mxu0 %v422
        %449 = vmatprep.subr.mxu0 0.0
        %450 = vmatpush1.msra.mxu0 %v423
        %451 = vmatprep.subr.mxu0 0.0
        %452 = vmatpush1.msra.mxu0 %v424
        %453 = vmatprep.subr.mxu0 0.0
        %454 = vmatpush1.msra.mxu0 %v425
        %455 = vmatprep.subr.mxu0 0.0
        %456 = vmatpush1.msra.mxu0 %v426
        %457 = vmatprep.subr.mxu0 0.0
        %458 = vmatpush1.msra.mxu0 %v427
        %459 = vmatprep.subr.mxu0 0.0
        %460 = vmatpush1.msra.mxu0 %v428
        %461 = vmatprep.subr.mxu0 0.0
        %462 = vmatpush1.msra.mxu0 %v429
        %463 = vmatprep.subr.mxu0 0.0
        %464 = vmatpush1.msra.mxu0 %v430
        %465 = vmatprep.subr.mxu0 0.0
        %466 = vmatpush1.msra.mxu0 %v431
        %467 = vmatprep.subr.mxu0 0.0
        %468 = vmatpush1.msra.mxu0 %v432
        %469 = vmatprep.subr.mxu0 0.0
        %470 = vmatpush1.msra.mxu0 %v433
        %471 = vmatprep.subr.mxu0 0.0
        %472 = vmatpush1.msra.mxu0 %v434
        %473 = vmatprep.subr.mxu0 0.0
        %474 = vmatpush1.msra.mxu0 %v435
        %475 = vmatprep.subr.mxu0 0.0
        %476 = vmatpush1.msra.mxu0 0.0
        %477 = vmatprep.subr.mxu0 0.0
        %478 = vmatpush1.msra.mxu0 0.0
        %479 = vmatprep.subr.mxu0 0.0
        %480 = vmatpush1.msra.mxu0 0.0
        %481 = vmatprep.subr.mxu0 0.0
        %482 = vmatpush1.msra.mxu0 0.0
        %483 = vmatprep.subr.mxu0 0.0
        %484 = vmatpush1.msra.mxu0 0.0
        %485 = vmatprep.subr.mxu0 0.0
        %486 = vmatpush1.msra.mxu0 0.0
        %487 = vmatprep.subr.mxu0 0.0
        %488 = vmatpush1.msra.mxu0 0.0
        %489 = vmatprep.subr.mxu0 0.0
        %490 = vmatpush1.msra.mxu0 0.0
        %491 = vmatprep.subr.mxu0 0.0
        %492 = vmatpush1.msra.mxu0 0.0
        %493 = vmatprep.subr.mxu0 0.0
        %494 = vmatpush1.msra.mxu0 0.0
        %495 = vmatprep.subr.mxu0 0.0
        %496 = vmatpush1.msra.mxu0 0.0
        %497 = vmatprep.subr.mxu0 0.0
        %498 = vmatpush1.msra.mxu0 0.0
        %499 = vmatprep.subr.mxu0 0.0
        %500 = vmatpush1.msra.mxu0 0.0
        %501 = vmatprep.subr.mxu0 0.0
        %502 = vmatpush1.msra.mxu0 0.0
        %503 = vmatprep.subr.mxu0 0.0
        %504 = vmatpush1.msra.mxu0 0.0
        %505 = vmatprep.subr.mxu0 0.0
        %506 = vmatpush1.msra.mxu0 0.0
        %507 = vmatprep.mubr.f32.mxu0 0.0
        %508 = vmatmul.mubr.f32.gmra.mrb[0].mxu0 %v416
        %v509 = vpop.f32.mrb[0].mxu0
        %v510 = vadd.f32 %v441, %v509
        %v511 = vpop.f32.mrb[0].mxu0
        %512 = vmatprep.mubr.f32.mxu0 0.0
        %513 = vmatmul.mubr.f32.gmra.mrb[0].mxu0 %v417
        %v514 = vpop.f32.mrb[0].mxu0
        %v515 = vadd.f32 %v441, %v514
        %v516 = vpop.f32.mrb[0].mxu0
        %517 = vmatprep.mubr.f32.mxu0 0.0
        %518 = vmatmul.mubr.f32.gmra.mrb[0].mxu0 %v418
        %v519 = vpop.f32.mrb[0].mxu0
        %v520 = vadd.f32 %v441, %v519
        %v521 = vpop.f32.mrb[0].mxu0
        %522 = vmatprep.mubr.f32.mxu0 0.0
        %523 = vmatmul.mubr.f32.gmra.mrb[0].mxu0 %v419
        %v524 = vpop.f32.mrb[0].mxu0
        %v525 = vadd.f32 %v441, %v524
        %v526 = vpop.f32.mrb[0].mxu0
        %527 = vdwg.mxu0
        %v528 = vmax.f32 %v510, 0.0
        %v529 = vmax.f32 %v515, 0.0
        %v530 = vmax.f32 %v520, 0.0
        %v531 = vmax.f32 %v525, 0.0
        %v532 = vld [vmem:[#allocation7] sm:$0xff]
        %v533 = vld [vmem:[#allocation7 + $0x8] sm:$0xff]
        %v534 = vld [vmem:[#allocation7 + $0x10] sm:$0xff]
        %v535 = vld [vmem:[#allocation7 + $0x18] sm:$0xff]
        %v536 = vld [vmem:[#allocation7 + $0x20] sm:$0xff]
        %v537 = vld [vmem:[#allocation7 + $0x28] sm:$0xff]
        %v538 = vld [vmem:[#allocation7 + $0x30] sm:$0xff]
        %v539 = vld [vmem:[#allocation7 + $0x38] sm:$0xff]
        %v540 = vld [vmem:[#allocation7 + $0x40] sm:$0xff]
        %v541 = vld [vmem:[#allocation7 + $0x48] sm:$0xff]
        %v542 = vld [vmem:[#allocation7 + $0x50] sm:$0xff]
        %v543 = vld [vmem:[#allocation7 + $0x58] sm:$0xff]
        %v544 = vld [vmem:[#allocation7 + $0x60] sm:$0xff]
        %v545 = vld [vmem:[#allocation7 + $0x68] sm:$0xff]
        %v546 = vld [vmem:[#allocation7 + $0x70] sm:$0xff]
        %v547 = vld [vmem:[#allocation7 + $0x78] sm:$0xff]
        %v548 = vld [vmem:[#allocation7 + $0x80] sm:$0xff]
        %v549 = vld [vmem:[#allocation7 + $0x88] sm:$0xff]
        %v550 = vld [vmem:[#allocation7 + $0x90] sm:$0xff]
        %v551 = vld [vmem:[#allocation7 + $0x98] sm:$0xff]
        %v552 = vld [vmem:[#allocation7 + $0xa0] sm:$0xff]
        %v553 = vld [vmem:[#allocation7 + $0xa8] sm:$0xff]
        %v554 = vld [vmem:[#allocation7 + $0xb0] sm:$0xff]
        %v555 = vld [vmem:[#allocation7 + $0xb8] sm:$0xff]
        %v556 = vld [vmem:[#allocation7 + $0xc0] sm:$0xff]
        %v557 = vld [vmem:[#allocation7 + $0xc8] sm:$0xff]
        %v558 = vld [vmem:[#allocation7 + $0xd0] sm:$0xff]
        %v559 = vld [vmem:[#allocation7 + $0xd8] sm:$0xff]
        %v560 = vld [vmem:[#allocation7 + $0xe0] sm:$0xff]
        %v561 = vld [vmem:[#allocation7 + $0xe8] sm:$0xff]
        %v562 = vld [vmem:[#allocation7 + $0xf0] sm:$0xff]
        %v563 = vld [vmem:[#allocation7 + $0xf8] sm:$0xff]
        %v564 = vld [vmem:[%s4] sm:$0x3]
        %v566 = vlaneseq
        %v567 = vshrl.u32 %v566, 7
        %v568 = vsub.s32 0, %v567
        %v569 = vrot.slane %v564, %v568
        %v570 = vlaneseq
        %v571 = vshrl.u32 %v570, 7
        %v572 = vsub.s32 1, %v571
        %v573 = vrot.slane %v564, %v572
        %576 = vmatprep.subr.mxu0 %v533
        %577 = vmatpush1.msra.mxu0 %v532
        %578 = vmatprep.subr.mxu0 %v535
        %579 = vmatpush1.msra.mxu0 %v534
        %580 = vmatprep.subr.mxu0 %v537
        %581 = vmatpush1.msra.mxu0 %v536
        %582 = vmatprep.subr.mxu0 %v539
        %583 = vmatpush1.msra.mxu0 %v538
        %584 = vmatprep.subr.mxu0 %v541
        %585 = vmatpush1.msra.mxu0 %v540
        %586 = vmatprep.subr.mxu0 %v543
        %587 = vmatpush1.msra.mxu0 %v542
        %588 = vmatprep.subr.mxu0 %v545
        %589 = vmatpush1.msra.mxu0 %v544
        %590 = vmatprep.subr.mxu0 %v547
        %591 = vmatpush1.msra.mxu0 %v546
        %592 = vmatprep.subr.mxu0 %v549
        %593 = vmatpush1.msra.mxu0 %v548
        %594 = vmatprep.subr.mxu0 %v551
        %595 = vmatpush1.msra.mxu0 %v550
        %596 = vmatprep.subr.mxu0 %v553
        %597 = vmatpush1.msra.mxu0 %v552
        %598 = vmatprep.subr.mxu0 %v555
        %599 = vmatpush1.msra.mxu0 %v554
        %600 = vmatprep.subr.mxu0 %v557
        %601 = vmatpush1.msra.mxu0 %v556
        %602 = vmatprep.subr.mxu0 %v559
        %603 = vmatpush1.msra.mxu0 %v558
        %604 = vmatprep.subr.mxu0 %v561
        %605 = vmatpush1.msra.mxu0 %v560
        %606 = vmatprep.subr.mxu0 %v563
        %607 = vmatpush1.msra.mxu0 %v562
        %608 = vmatprep.subr.mxu0 0.0
        %609 = vmatpush1.msra.mxu0 0.0
        %610 = vmatprep.subr.mxu0 0.0
        %611 = vmatpush1.msra.mxu0 0.0
        %612 = vmatprep.subr.mxu0 0.0
        %613 = vmatpush1.msra.mxu0 0.0
        %614 = vmatprep.subr.mxu0 0.0
        %615 = vmatpush1.msra.mxu0 0.0
        %616 = vmatprep.subr.mxu0 0.0
        %617 = vmatpush1.msra.mxu0 0.0
        %618 = vmatprep.subr.mxu0 0.0
        %619 = vmatpush1.msra.mxu0 0.0
        %620 = vmatprep.subr.mxu0 0.0
        %621 = vmatpush1.msra.mxu0 0.0
        %622 = vmatprep.subr.mxu0 0.0
        %623 = vmatpush1.msra.mxu0 0.0
        %624 = vmatprep.subr.mxu0 0.0
        %625 = vmatpush1.msra.mxu0 0.0
        %626 = vmatprep.subr.mxu0 0.0
        %627 = vmatpush1.msra.mxu0 0.0
        %628 = vmatprep.subr.mxu0 0.0
        %629 = vmatpush1.msra.mxu0 0.0
        %630 = vmatprep.subr.mxu0 0.0
        %631 = vmatpush1.msra.mxu0 0.0
        %632 = vmatprep.subr.mxu0 0.0
        %633 = vmatpush1.msra.mxu0 0.0
        %634 = vmatprep.subr.mxu0 0.0
        %635 = vmatpush1.msra.mxu0 0.0
        %636 = vmatprep.subr.mxu0 0.0
        %637 = vmatpush1.msra.mxu0 0.0
        %638 = vmatprep.subr.mxu0 0.0
        %639 = vmatpush1.msra.mxu0 0.0
        %640 = vmatprep.mubr.f32.mxu0 0.0
        %641 = vmatmul.mubr.f32.gmra.mrb[0].mxu0 %v528
        %v642 = vpop.f32.mrb[0].mxu0
        %v643 = vadd.f32 %v569, %v642
        %v644 = vpop.f32.mrb[0].mxu0
        %v645 = vadd.f32 %v573, %v644
        %646 = vmatprep.mubr.f32.mxu0 0.0
        %647 = vmatmul.mubr.f32.gmra.mrb[0].mxu0 %v529
        %v648 = vpop.f32.mrb[0].mxu0
        %v649 = vadd.f32 %v569, %v648
        %v650 = vpop.f32.mrb[0].mxu0
        %v651 = vadd.f32 %v573, %v650
        %652 = vmatprep.mubr.f32.mxu0 0.0
        %653 = vmatmul.mubr.f32.gmra.mrb[0].mxu0 %v530
        %v654 = vpop.f32.mrb[0].mxu0
        %v655 = vadd.f32 %v569, %v654
        %v656 = vpop.f32.mrb[0].mxu0
        %v657 = vadd.f32 %v573, %v656
        %658 = vmatprep.mubr.f32.mxu0 0.0
        %659 = vmatmul.mubr.f32.gmra.mrb[0].mxu0 %v531
        %v660 = vpop.f32.mrb[0].mxu0
        %v661 = vadd.f32 %v569, %v660
        %v662 = vpop.f32.mrb[0].mxu0
        %v663 = vadd.f32 %v573, %v662
        %664 = vdwg.mxu0
        %v665 = vld [vmem:[%s363] sm:$0xff]
        %v666 = vld [vmem:[%s363 + $0x8] sm:$0xff]
        %v667 = vld [vmem:[%s363 + $0x10] sm:$0xff]
        %v668 = vld [vmem:[%s363 + $0x18] sm:$0xff]
        %v669 = vmul.f32 %v645, 0.5
        %v670 = vmul.f32 %v651, 0.5
        %v671 = vmul.f32 %v657, 0.5
        %v672 = vmul.f32 %v663, 0.5
        %v673 = vmul.f32 %v669, 1.442695
        %v674 = vpow.pop %v673
        %v675 = vmul.f32 %v670, 1.442695
        %v676 = vpow.pop %v675
        %v677 = vmul.f32 %v671, 1.442695
        %v678 = vpow.pop %v677
        %v679 = vmul.f32 %v672, 1.442695
        %v680 = vpow.pop %v679
        %v681 = vmul.f32 %v665, %v674
        %v682 = vmul.f32 %v666, %v676
        %v683 = vmul.f32 %v667, %v678
        %v684 = vmul.f32 %v668, %v680
        %v685 = vadd.f32 %v681, %v643
        %v686 = vadd.f32 %v682, %v649
        %v687 = vadd.f32 %v683, %v655
        %v688 = vadd.f32 %v684, %v661
        %689 = vst [vmem:[%s396] sm:$0xff] %v685
        %690 = vst [vmem:[%s396 + $0x8] sm:$0xff] %v686
        %691 = vst [vmem:[%s396 + $0x10] sm:$0xff] %v687
        %692 = vst [vmem:[%s396 + $0x18] sm:$0xff] %v688
        %693 = vst [vmem:[%s403] sm:$0xff] %v643
        %694 = vst [vmem:[%s403 + $0x8] sm:$0xff] %v649
        %695 = vst [vmem:[%s403 + $0x10] sm:$0xff] %v655
        %696 = vst [vmem:[%s403 + $0x18] sm:$0xff] %v661
        %697 = vst [vmem:[%s410] sm:$0xff] %v645
        %698 = vst [vmem:[%s410 + $0x8] sm:$0xff] %v651
        %699 = vst [vmem:[%s410 + $0x10] sm:$0xff] %v657
        %700 = vst [vmem:[%s410 + $0x18] sm:$0xff] %v663
        %s701 = sand.u32 %s177, 1
        %s702 = scalar_lea.sflag [#allocation4], %s701
        %s703 = sand.u32 %s177, 1
        %s704 = smul.addr %s703, 32
        %s705 = scalar_lea.vmem [#allocation10], %s704
        %s706 = sand.u32 %s33, 1
        %s707 = scalar_lea.sflag [#allocation12], %s706
        %s708 = sand.u32 %s203, 1
        %s709 = smul.addr %s708, 32
        %s710 = scalar_lea.vmem [#allocation11], %s709
        %s711 = sand.u32 %s33, 1
        %s712 = scalar_lea.sflag [#allocation12], %s711
        %s713 = sand.u32 %s229, 1
        %s714 = smul.addr %s713, 32
        %s715 = scalar_lea.vmem [#allocation13], %s714
        // Predicated region
        $region61: #{tpu_custom_call.1} parent=43 // pred_check
          %p716 = pneg %p187
        $region62: #{tpu_custom_call.1} parent=43 // pred_check_branch
          %718 = sbr.rel (%p716) target = $region64
        $region63: #{tpu_custom_call.1} parent=43 // pred_region
          %s719 = smul.u32 4, %s33
          %s721 = ssub.s32 512, 512
          %722 = vsyncadd %s702, %s721
          %s723 = smul.addr %s719, 128
          %s724 = scalar_lea.hbm %s6, %s723
          %s725 = sshll.u32 %s705, 4
          %s726 = int_to_ptr.vmem [resolvable:$true] %s725
          %731 = dma.vmem_to_hbm [thread:$0]  %s726, 512, %s724, %s702, 128, 128, 8
        $region64: #{tpu_custom_call.1} parent=43 // pred_fallthru
          _
        // Predicated region
        $region65: #{tpu_custom_call.1} parent=43 // pred_check
          %p732 = pneg %p213
        $region66: #{tpu_custom_call.1} parent=43 // pred_check_branch
          %734 = sbr.rel (%p732) target = $region68
        $region67: #{tpu_custom_call.1} parent=43 // pred_region
          %s735 = smul.u32 4, %s33
          %s737 = ssub.s32 512, 512
          %738 = vsyncadd %s707, %s737
          %s739 = smul.addr %s735, 128
          %s740 = scalar_lea.hbm %s7, %s739
          %s741 = sshll.u32 %s710, 4
          %s742 = int_to_ptr.vmem [resolvable:$true] %s741
          %747 = dma.vmem_to_hbm [thread:$0]  %s742, 512, %s740, %s707, 128, 128, 8
        $region68: #{tpu_custom_call.1} parent=43 // pred_fallthru
          _
        // Predicated region
        $region69: #{tpu_custom_call.1} parent=43 // pred_check
          %p748 = pneg %p239
        $region70: #{tpu_custom_call.1} parent=43 // pred_check_branch
          %750 = sbr.rel (%p748) target = $region72
        $region71: #{tpu_custom_call.1} parent=43 // pred_region
          %s751 = smul.u32 4, %s33
          %s753 = ssub.s32 512, 512
          %754 = vsyncadd %s712, %s753
          %s755 = smul.addr %s751, 128
          %s756 = scalar_lea.hbm %s8, %s755
          %s757 = sshll.u32 %s715, 4
          %s758 = int_to_ptr.vmem [resolvable:$true] %s757
          %763 = dma.vmem_to_hbm [thread:$0]  %s758, 512, %s756, %s712, 128, 128, 8
        $region72: #{tpu_custom_call.1} parent=43 // pred_fallthru
          _
      $region44: #{tpu_custom_call.1} parent=5 // pred_fallthru
        _
      %p764 = scmp.le.s32.totalorder 2, %s28
      // Predicated region
      $region73: #{tpu_custom_call.1} parent=5 // pred_check
        %p765 = pneg %p764
      $region74: #{tpu_custom_call.1} parent=5 // pred_check_branch
        %767 = sbr.rel (%p765) target = $region76
      $region75: #{tpu_custom_call.1} parent=5 // pred_region
        %s768 = ssub.s32 %s28, 2
        // Predicated region
        $region77: #{tpu_custom_call.1} parent=75 // pred_check
          %p769 = pneg %p193
        $region78: #{tpu_custom_call.1} parent=75 // pred_check_branch
          %771 = sbr.rel (%p769) target = $region80
        $region79: #{tpu_custom_call.1} parent=75 // pred_region
          %s772 = sand.u32 %s178, 1
          %s773 = scalar_lea.sflag [#allocation4], %s772
          %s774 = sand.u32 %s178, 1
          %s775 = smul.addr %s774, 32
          %s776 = scalar_lea.vmem [#allocation10], %s775
          %777 = dma.done %s773, 512
        $region80: #{tpu_custom_call.1} parent=75 // pred_fallthru
          _
        // Predicated region
        $region81: #{tpu_custom_call.1} parent=75 // pred_check
          %p778 = pneg %p219
        $region82: #{tpu_custom_call.1} parent=75 // pred_check_branch
          %780 = sbr.rel (%p778) target = $region84
        $region83: #{tpu_custom_call.1} parent=75 // pred_region
          %s781 = sand.u32 %s34, 1
          %s782 = scalar_lea.sflag [#allocation12], %s781
          %s783 = sand.u32 %s204, 1
          %s784 = smul.addr %s783, 32
          %s785 = scalar_lea.vmem [#allocation11], %s784
          %786 = dma.done %s782, 512
        $region84: #{tpu_custom_call.1} parent=75 // pred_fallthru
          _
        // Predicated region
        $region85: #{tpu_custom_call.1} parent=75 // pred_check
          %p787 = pneg %p245
        $region86: #{tpu_custom_call.1} parent=75 // pred_check_branch
          %789 = sbr.rel (%p787) target = $region88
        $region87: #{tpu_custom_call.1} parent=75 // pred_region
          %s790 = sand.u32 %s34, 1
          %s791 = scalar_lea.sflag [#allocation12], %s790
          %s792 = sand.u32 %s230, 1
          %s793 = smul.addr %s792, 32
          %s794 = scalar_lea.vmem [#allocation13], %s793
          %795 = dma.done %s791, 512
        $region88: #{tpu_custom_call.1} parent=75 // pred_fallthru
          _
      $region76: #{tpu_custom_call.1} parent=5 // pred_fallthru
        _
    $region6: #{tpu_custom_call.1} parent=1 // loop_footer
      %s32 = sadd.s32 1, %s28
    $region7: #{tpu_custom_call.1} parent=1 // loop_footer_branch
      %27 = sbr.rel target = $region3
    $region8: #{tpu_custom_call.1} parent=1 // loop_exit
      _
    %796 = vsyncpa [#allocation3], 1
    %s797 = scalar_lea.sflag [#allocation3], 1
    %798 = vsyncpa %s797, 1
    %799 = vsyncpa [#allocation6], 1
    %800 = vsyncpa [#allocation9], 1
    %s801 = scalar_lea.sflag [#allocation9], 1
    %802 = vsyncpa %s801, 1
    %803 = vsyncpa [#allocation4], 1
    %s804 = scalar_lea.sflag [#allocation4], 1
    %805 = vsyncpa %s804, 1
    %806 = vsyncpa [#allocation12], 1
    %s807 = scalar_lea.sflag [#allocation12], 1
    %808 = vsyncpa %s807, 1

</llo_original>
